<compile_context>
chip_gen: v7x
topology: tpu7x:2x2x1
jax: 0.10.0
libtpu: 0.0.40
codegen_flags: <defaults>
</compile_context>

<pallas_src>
import numpy as np
import jax
import jax.numpy as jnp
from jax import lax
from jax.experimental import pallas as pl
from jax.experimental.pallas import tpu as pltpu


def _lang_rec_loss_kernel(data_ref, tbl_ref, wfcb_ref, out_ref):
    # data_ref : (T*N, 3) int32   columns = [tok, dec, valid]
    # tbl_ref  : (V+N+H, 4H) f32  rows    = [gate_table | vis_g | whh]
    # wfcb_ref : (H+1, V) f32     rows    = [wfc | bfc]
    TN = data_ref.shape[0]
    Hp1, V = wfcb_ref.shape
    H = Hp1 - 1
    N = tbl_ref.shape[0] - V - H
    T = TN // N

    tok = data_ref[:, 0:1]                                          # (T*N, 1)
    dec = data_ref[:, 1:2]
    valid = (data_ref[:, 2:3] > 0).astype(jnp.float32)              # (T*N, 1)

    gate_tbl = tbl_ref[0:V, :]                                      # (V, 4H)
    vis_g = tbl_ref[V:V + N, :]                                     # (N, 4H)
    whh = tbl_ref[V + N:V + N + H, :]                               # (H, 4H)

    # ---------------- batched prologue: one-hot @ folded gate table ----------
    onehot = (lax.broadcasted_iota(jnp.int32, (TN, V), 1) == tok).astype(jnp.float32)
    gx = jnp.dot(onehot, gate_tbl, preferred_element_type=jnp.float32)  # (T*N, 4H)

    # ---------------- serial LSTM recurrence (fully unrolled, T static) ------
    # Perf option (not taken, accuracy margin is tight vs the 5e-3 check):
    # cast h/whh to bf16 for the MXU; also whh could be held resident via
    # pltpu.matmul_push_rhs/matmul_acc_lhs, and i/f/g/o could be lane-aligned
    # with pltpu.roll instead of slices.
    h = jnp.zeros((N, H), jnp.float32)
    c = jnp.zeros((N, H), jnp.float32)
    h_steps = []
    for t in range(T):
        g = gx[t * N:(t + 1) * N, :] + jnp.dot(
            h, whh, preferred_element_type=jnp.float32)             # (N, 4H)
        if t == 0:
            g = g + vis_g                 # one-time visual-feature injection
        # two full-width EUP passes, then static lane slices (i|f|g|o)
        sig = jax.nn.sigmoid(g)
        th = jnp.tanh(g)
        i_g = sig[:, 0:H]
        f_g = sig[:, H:2 * H]
        g_g = th[:, 2 * H:3 * H]
        o_g = sig[:, 3 * H:4 * H]
        c = f_g * c + i_g * g_g
        h = o_g * jnp.tanh(c)
        h_steps.append(h)

    # ---------------- batched epilogue: mask + fc + masked cross-entropy -----
    # pad_packed_sequence: zero outputs at steps >= sentence length
    h_all = jnp.concatenate(h_steps, axis=0) * valid                # (T*N, H)
    wfc = wfcb_ref[0:H, :]
    bfc = wfcb_ref[H:H + 1, :]
    logits = jnp.dot(h_all, wfc, preferred_element_type=jnp.float32) + bfc

    dec_mask = (dec != 0).astype(jnp.float32)
    lbl_onehot = (lax.broadcasted_iota(jnp.int32, (TN, V), 1) == dec
                  ).astype(jnp.float32)
    lbl_logit = jnp.sum(lbl_onehot * logits, axis=1, keepdims=True)
    mx = jnp.max(logits, axis=1, keepdims=True)
    lse = mx + jnp.log(jnp.sum(jnp.exp(logits - mx), axis=1, keepdims=True))
    ce = lse - lbl_logit                                            # (T*N, 1)

    loss_sum = jnp.sum(ce * dec_mask, axis=(0, 1), keepdims=True)
    mask_sum = jnp.sum(dec_mask, axis=(0, 1), keepdims=True)
    # NOTE: divides by zero if every dec label is padding (same as reference).
    out_ref[...] = loss_sum / mask_sum


@jax.jit
def lang_reconstruction_loss(vis_att_fuse, enc_labels, dec_labels, params):
    """Pallas implementation of LangReconstructionLoss.forward (no host sync)."""
    N, T = enc_labels.shape
    Wv = params["wmlp"].shape[1]

    # --- on-device replication of the variable-length sort bookkeeping ---
    lengths = jnp.sum((enc_labels != 0).astype(jnp.int32), axis=1)          # (N,)
    # reverse of a stable ascending argsort == np.argsort(...,'stable')[::-1]
    sort_ixs = jnp.flip(jnp.argsort(lengths))
    lengths_sorted = lengths[sort_ixs]
    enc_sorted = enc_labels[sort_ixs]                                       # (N, T)
    dec_sorted = dec_labels[sort_ixs]                                       # (N, T)
    # TODO(synk): the original host-side `assert max(lengths) == seq_len` needs a
    # host sync and is dropped on this device-only path.

    tok_tm = enc_sorted.T.reshape(T * N).astype(jnp.int32)      # time-major flatten
    dec_tm = dec_sorted.T.reshape(T * N).astype(jnp.int32)
    valid_tm = (jnp.arange(T, dtype=jnp.int32)[:, None]
                < lengths_sorted[None, :]).astype(jnp.int32).reshape(T * N)
    data = jnp.stack([tok_tm, dec_tm, valid_tm], axis=1)        # (T*N, 3) int32

    # --- fold emb -> MLP -> input-gate weights into one (V, 4H) gate table ---
    # Exact: one-hot row selection commutes with the row-wise Linear+ReLU chain.
    gate_tbl = (jax.nn.relu(params["emb"] @ params["wmlp"] + params["bmlp"])
                @ params["wih"][0:Wv, :] + params["brnn"])               # (V, 4H)
    # visual branch of W_ih (only injected at t = 0 inside the kernel)
    # NOTE: vis rows are intentionally NOT permuted (reproduces the original
    # code, which pairs un-sorted vis features with sorted sentences).
    vis_g = vis_att_fuse.astype(jnp.float32) @ params["wih"][Wv:2 * Wv, :]  # (N, 4H)

    tbl = jnp.concatenate([gate_tbl, vis_g, params["whh"]], axis=0)  # (V+N+H, 4H)
    wfcb = jnp.concatenate([params["wfc"], params["bfc"]], axis=0)   # (H+1, V)

    out = pl.pallas_call(
        _lang_rec_loss_kernel,
        out_shape=jax.ShapeDtypeStruct((1, 1), jnp.float32),
        in_specs=[pl.BlockSpec(memory_space=pltpu.MemorySpace.VMEM)] * 3,
        out_specs=pl.BlockSpec(memory_space=pltpu.MemorySpace.VMEM),
    )(data, tbl, wfcb)
    return out[0, 0]


def reference_loss(vis, enc, dec, p):
    """Pure-JAX replica of the PyTorch forward (for verification only)."""
    N, T = enc.shape
    Wv = p["wmlp"].shape[1]
    H = p["whh"].shape[0]

    enc_np = np.asarray(jax.device_get(enc))
    lens = (enc_np != 0).sum(1)
    sort_ixs = np.argsort(lens, kind="stable")[::-1].copy()
    lens_sorted = lens[sort_ixs].astype(np.int32)
    sort_ixs_j = jnp.array(sort_ixs, dtype=jnp.int32)
    enc_s = enc[sort_ixs_j]
    dec_s = dec[sort_ixs_j]

    emb = p["emb"][enc_s]                                          # (N,T,We)
    hid = jax.nn.relu(emb @ p["wmlp"] + p["bmlp"])                 # (N,T,Wv)
    vis_time = jnp.concatenate(
        [vis[:, None, :], jnp.zeros((N, T - 1, Wv), jnp.float32)], axis=1)
    x = jnp.concatenate([hid, vis_time], axis=2)                   # (N,T,2Wv)

    h = jnp.zeros((N, H), jnp.float32)
    c = jnp.zeros((N, H), jnp.float32)
    outs = []
    lens_j = jnp.array(lens_sorted)
    for t in range(T):
        gates = x[:, t, :] @ p["wih"] + h @ p["whh"] + p["brnn"]
        i = jax.nn.sigmoid(gates[:, :H])
        f = jax.nn.sigmoid(gates[:, H:2 * H])
        g = jnp.tanh(gates[:, 2 * H:3 * H])
        o = jax.nn.sigmoid(gates[:, 3 * H:])
        c = f * c + i * g
        h = o * jnp.tanh(c)
        valid = (lens_j > t)[:, None]
        outs.append(jnp.where(valid, h, 0.0))
    out = jnp.stack(outs, axis=1).reshape(N * T, H)

    logits = out @ p["wfc"] + p["bfc"]
    dec_flat = dec_s.reshape(-1)
    mask = (dec_flat != 0).astype(jnp.float32)
    lse = jax.scipy.special.logsumexp(logits, axis=1)
    lbl = logits[jnp.arange(N * T), dec_flat]
    ce = lse - lbl
    return jnp.sum(ce * mask) / jnp.sum(mask)


if __name__ == "__main__":
    N, T = 8, 8            # sent_num, seq_len
    V, We, Wv, H = 32, 32, 32, 32

    key = jax.random.PRNGKey(0)
    ks = jax.random.split(key, 12)

    # deterministic "weights" (stored (in_features, out_features))
    params = {
        "emb":  0.2 * jax.random.normal(ks[0], (V, We), jnp.float32),
        "wmlp": 0.2 * jax.random.normal(ks[1], (We, Wv), jnp.float32),
        "bmlp": 0.1 * jax.random.normal(ks[2], (1, Wv), jnp.float32),
        "wih":  0.2 * jax.random.normal(ks[3], (2 * Wv, 4 * H), jnp.float32),
        "whh":  0.2 * jax.random.normal(ks[4], (H, 4 * H), jnp.float32),
        "brnn": 0.1 * jax.random.normal(ks[5], (1, 4 * H), jnp.float32),
        "wfc":  0.2 * jax.random.normal(ks[6], (H, V), jnp.float32),
        "bfc":  0.1 * jax.random.normal(ks[7], (1, V), jnp.float32),
    }

    # deterministic inputs with variable lengths (max length == T as required)
    lengths = np.array([8, 6, 8, 5, 7, 4, 8, 3], dtype=np.int32)
    t_iota = np.arange(T)[None, :]
    enc_np = np.asarray(jax.random.randint(ks[8], (N, T), 1, V))
    dec_np = np.asarray(jax.random.randint(ks[9], (N, T), 1, V))
    enc_np = np.where(t_iota < lengths[:, None], enc_np, 0)
    dec_np = np.where(t_iota < lengths[:, None], dec_np, 0)
    enc_labels = jnp.array(enc_np, dtype=jnp.int32)
    dec_labels = jnp.array(dec_np, dtype=jnp.int32)

    vis_att_fuse = jax.random.normal(ks[10], (N, Wv), jnp.float32)

    loss = lang_reconstruction_loss(vis_att_fuse, enc_labels, dec_labels, params)
    loss = jax.block_until_ready(loss)

    ref = reference_loss(vis_att_fuse, enc_labels, dec_labels, params)
    np.testing.assert_allclose(np.asarray(loss), np.asarray(ref),
                               rtol=5e-3, atol=5e-3)
    print("KERNEL_OK")
</pallas_src>

<mosaic_0001>
module attributes {stable_mosaic.version = 11 : i64} {
  func.func @_lang_rec_loss_kernel(%arg0: memref<64x3xi32, #tpu.memory_space<vmem>>, %arg1: memref<72x128xf32, #tpu.memory_space<vmem>>, %arg2: memref<33x32xf32, #tpu.memory_space<vmem>>, %arg3: memref<1x1xf32, #tpu.memory_space<vmem>>) attributes {dimension_semantics = [], scalar_prefetch = 0 : i64, scratch_operands = 0 : i64, tpu.core_type = #tpu.core_type<tc>} {
    %c0 = arith.constant 0 : index
    %c0_0 = arith.constant 0 : index
    %0 = vector.load %arg0[%c0, %c0_0] : memref<64x3xi32, #tpu.memory_space<vmem>>, vector<64x1xi32>
    %c0_1 = arith.constant 0 : index
    %c1 = arith.constant 1 : index
    %1 = vector.load %arg0[%c0_1, %c1] : memref<64x3xi32, #tpu.memory_space<vmem>>, vector<64x1xi32>
    %c0_2 = arith.constant 0 : index
    %c2 = arith.constant 2 : index
    %2 = vector.load %arg0[%c0_2, %c2] : memref<64x3xi32, #tpu.memory_space<vmem>>, vector<64x1xi32>
    %c0_i32 = arith.constant 0 : i32
    %3 = vector.broadcast %c0_i32 : i32 to vector<64x1xi32>
    %4 = arith.cmpi sgt, %2, %3 : vector<64x1xi32>
    %5 = arith.extui %4 : vector<64x1xi1> to vector<64x1xi32>
    %6 = arith.sitofp %5 : vector<64x1xi32> to vector<64x1xf32>
    %c0_3 = arith.constant 0 : index
    %c0_4 = arith.constant 0 : index
    %7 = vector.load %arg1[%c0_3, %c0_4] : memref<72x128xf32, #tpu.memory_space<vmem>>, vector<32x128xf32>
    %c32 = arith.constant 32 : index
    %c0_5 = arith.constant 0 : index
    %8 = vector.load %arg1[%c32, %c0_5] : memref<72x128xf32, #tpu.memory_space<vmem>>, vector<8x128xf32>
    %c40 = arith.constant 40 : index
    %c0_6 = arith.constant 0 : index
    %9 = vector.load %arg1[%c40, %c0_6] : memref<72x128xf32, #tpu.memory_space<vmem>>, vector<32x128xf32>
    %10 = tpu.iota {dimensions = array<i32: 1>} : vector<64x32xi32>
    %11 = vector.broadcast %0 : vector<64x1xi32> to vector<64x32xi32>
    %12 = arith.cmpi eq, %10, %11 : vector<64x32xi32>
    %13 = arith.extui %12 : vector<64x32xi1> to vector<64x32xi32>
    %14 = arith.sitofp %13 : vector<64x32xi32> to vector<64x32xf32>
    %cst = arith.constant dense<0.000000e+00> : vector<64x128xf32>
    %15 = tpu.matmul %14, %7, %cst {dimension_numbers = #tpu.dot_dimension_numbers<[1], [0], [0], [1], [0, 0, 1, 1], [], []>} : vector<64x32xf32>, vector<32x128xf32>, vector<64x128xf32> -> vector<64x128xf32>
    %cst_7 = arith.constant 0.000000e+00 : f32
    %16 = vector.broadcast %cst_7 : f32 to vector<8x32xf32>
    %cst_8 = arith.constant 0.000000e+00 : f32
    %17 = vector.broadcast %cst_8 : f32 to vector<8x32xf32>
    %18 = vector.extract_strided_slice %15 {offsets = [0, 0], sizes = [8, 128], strides = [1, 1]} : vector<64x128xf32> to vector<8x128xf32>
    %cst_9 = arith.constant dense<0.000000e+00> : vector<8x128xf32>
    %19 = tpu.matmul %16, %9, %cst_9 {dimension_numbers = #tpu.dot_dimension_numbers<[1], [0], [0], [1], [0, 0, 1, 1], [], []>} : vector<8x32xf32>, vector<32x128xf32>, vector<8x128xf32> -> vector<8x128xf32>
    %20 = arith.addf %18, %19 : vector<8x128xf32>
    %21 = arith.addf %20, %8 : vector<8x128xf32>
    %22 = arith.negf %21 : vector<8x128xf32>
    %23 = math.exp %22 : vector<8x128xf32>
    %cst_10 = arith.constant 1.000000e+00 : f32
    %24 = vector.broadcast %cst_10 : f32 to vector<8x128xf32>
    %25 = arith.addf %24, %23 : vector<8x128xf32>
    %26 = arith.divf %24, %25 : vector<8x128xf32>
    %27 = math.tanh %21 : vector<8x128xf32>
    %28 = vector.extract_strided_slice %26 {offsets = [0, 0], sizes = [8, 32], strides = [1, 1]} : vector<8x128xf32> to vector<8x32xf32>
    %29 = vector.extract_strided_slice %26 {offsets = [0, 32], sizes = [8, 32], strides = [1, 1]} : vector<8x128xf32> to vector<8x32xf32>
    %30 = vector.extract_strided_slice %27 {offsets = [0, 64], sizes = [8, 32], strides = [1, 1]} : vector<8x128xf32> to vector<8x32xf32>
    %31 = vector.extract_strided_slice %26 {offsets = [0, 96], sizes = [8, 32], strides = [1, 1]} : vector<8x128xf32> to vector<8x32xf32>
    %32 = arith.mulf %29, %17 : vector<8x32xf32>
    %33 = arith.mulf %28, %30 : vector<8x32xf32>
    %34 = arith.addf %32, %33 : vector<8x32xf32>
    %35 = math.tanh %34 : vector<8x32xf32>
    %36 = arith.mulf %31, %35 : vector<8x32xf32>
    %37 = vector.extract_strided_slice %15 {offsets = [8, 0], sizes = [8, 128], strides = [1, 1]} : vector<64x128xf32> to vector<8x128xf32>
    %cst_11 = arith.constant dense<0.000000e+00> : vector<8x128xf32>
    %38 = tpu.matmul %36, %9, %cst_11 {dimension_numbers = #tpu.dot_dimension_numbers<[1], [0], [0], [1], [0, 0, 1, 1], [], []>} : vector<8x32xf32>, vector<32x128xf32>, vector<8x128xf32> -> vector<8x128xf32>
    %39 = arith.addf %37, %38 : vector<8x128xf32>
    %40 = arith.negf %39 : vector<8x128xf32>
    %41 = math.exp %40 : vector<8x128xf32>
    %cst_12 = arith.constant 1.000000e+00 : f32
    %42 = vector.broadcast %cst_12 : f32 to vector<8x128xf32>
    %43 = arith.addf %42, %41 : vector<8x128xf32>
    %44 = arith.divf %42, %43 : vector<8x128xf32>
    %45 = math.tanh %39 : vector<8x128xf32>
    %46 = vector.extract_strided_slice %44 {offsets = [0, 0], sizes = [8, 32], strides = [1, 1]} : vector<8x128xf32> to vector<8x32xf32>
    %47 = vector.extract_strided_slice %44 {offsets = [0, 32], sizes = [8, 32], strides = [1, 1]} : vector<8x128xf32> to vector<8x32xf32>
    %48 = vector.extract_strided_slice %45 {offsets = [0, 64], sizes = [8, 32], strides = [1, 1]} : vector<8x128xf32> to vector<8x32xf32>
    %49 = vector.extract_strided_slice %44 {offsets = [0, 96], sizes = [8, 32], strides = [1, 1]} : vector<8x128xf32> to vector<8x32xf32>
    %50 = arith.mulf %47, %34 : vector<8x32xf32>
    %51 = arith.mulf %46, %48 : vector<8x32xf32>
    %52 = arith.addf %50, %51 : vector<8x32xf32>
    %53 = math.tanh %52 : vector<8x32xf32>
    %54 = arith.mulf %49, %53 : vector<8x32xf32>
    %55 = vector.extract_strided_slice %15 {offsets = [16, 0], sizes = [8, 128], strides = [1, 1]} : vector<64x128xf32> to vector<8x128xf32>
    %cst_13 = arith.constant dense<0.000000e+00> : vector<8x128xf32>
    %56 = tpu.matmul %54, %9, %cst_13 {dimension_numbers = #tpu.dot_dimension_numbers<[1], [0], [0], [1], [0, 0, 1, 1], [], []>} : vector<8x32xf32>, vector<32x128xf32>, vector<8x128xf32> -> vector<8x128xf32>
    %57 = arith.addf %55, %56 : vector<8x128xf32>
    %58 = arith.negf %57 : vector<8x128xf32>
    %59 = math.exp %58 : vector<8x128xf32>
    %cst_14 = arith.constant 1.000000e+00 : f32
    %60 = vector.broadcast %cst_14 : f32 to vector<8x128xf32>
    %61 = arith.addf %60, %59 : vector<8x128xf32>
    %62 = arith.divf %60, %61 : vector<8x128xf32>
    %63 = math.tanh %57 : vector<8x128xf32>
    %64 = vector.extract_strided_slice %62 {offsets = [0, 0], sizes = [8, 32], strides = [1, 1]} : vector<8x128xf32> to vector<8x32xf32>
    %65 = vector.extract_strided_slice %62 {offsets = [0, 32], sizes = [8, 32], strides = [1, 1]} : vector<8x128xf32> to vector<8x32xf32>
    %66 = vector.extract_strided_slice %63 {offsets = [0, 64], sizes = [8, 32], strides = [1, 1]} : vector<8x128xf32> to vector<8x32xf32>
    %67 = vector.extract_strided_slice %62 {offsets = [0, 96], sizes = [8, 32], strides = [1, 1]} : vector<8x128xf32> to vector<8x32xf32>
    %68 = arith.mulf %65, %52 : vector<8x32xf32>
    %69 = arith.mulf %64, %66 : vector<8x32xf32>
    %70 = arith.addf %68, %69 : vector<8x32xf32>
    %71 = math.tanh %70 : vector<8x32xf32>
    %72 = arith.mulf %67, %71 : vector<8x32xf32>
    %73 = vector.extract_strided_slice %15 {offsets = [24, 0], sizes = [8, 128], strides = [1, 1]} : vector<64x128xf32> to vector<8x128xf32>
    %cst_15 = arith.constant dense<0.000000e+00> : vector<8x128xf32>
    %74 = tpu.matmul %72, %9, %cst_15 {dimension_numbers = #tpu.dot_dimension_numbers<[1], [0], [0], [1], [0, 0, 1, 1], [], []>} : vector<8x32xf32>, vector<32x128xf32>, vector<8x128xf32> -> vector<8x128xf32>
    %75 = arith.addf %73, %74 : vector<8x128xf32>
    %76 = arith.negf %75 : vector<8x128xf32>
    %77 = math.exp %76 : vector<8x128xf32>
    %cst_16 = arith.constant 1.000000e+00 : f32
    %78 = vector.broadcast %cst_16 : f32 to vector<8x128xf32>
    %79 = arith.addf %78, %77 : vector<8x128xf32>
    %80 = arith.divf %78, %79 : vector<8x128xf32>
    %81 = math.tanh %75 : vector<8x128xf32>
    %82 = vector.extract_strided_slice %80 {offsets = [0, 0], sizes = [8, 32], strides = [1, 1]} : vector<8x128xf32> to vector<8x32xf32>
    %83 = vector.extract_strided_slice %80 {offsets = [0, 32], sizes = [8, 32], strides = [1, 1]} : vector<8x128xf32> to vector<8x32xf32>
    %84 = vector.extract_strided_slice %81 {offsets = [0, 64], sizes = [8, 32], strides = [1, 1]} : vector<8x128xf32> to vector<8x32xf32>
    %85 = vector.extract_strided_slice %80 {offsets = [0, 96], sizes = [8, 32], strides = [1, 1]} : vector<8x128xf32> to vector<8x32xf32>
    %86 = arith.mulf %83, %70 : vector<8x32xf32>
    %87 = arith.mulf %82, %84 : vector<8x32xf32>
    %88 = arith.addf %86, %87 : vector<8x32xf32>
    %89 = math.tanh %88 : vector<8x32xf32>
    %90 = arith.mulf %85, %89 : vector<8x32xf32>
    %91 = vector.extract_strided_slice %15 {offsets = [32, 0], sizes = [8, 128], strides = [1, 1]} : vector<64x128xf32> to vector<8x128xf32>
    %cst_17 = arith.constant dense<0.000000e+00> : vector<8x128xf32>
    %92 = tpu.matmul %90, %9, %cst_17 {dimension_numbers = #tpu.dot_dimension_numbers<[1], [0], [0], [1], [0, 0, 1, 1], [], []>} : vector<8x32xf32>, vector<32x128xf32>, vector<8x128xf32> -> vector<8x128xf32>
    %93 = arith.addf %91, %92 : vector<8x128xf32>
    %94 = arith.negf %93 : vector<8x128xf32>
    %95 = math.exp %94 : vector<8x128xf32>
    %cst_18 = arith.constant 1.000000e+00 : f32
    %96 = vector.broadcast %cst_18 : f32 to vector<8x128xf32>
    %97 = arith.addf %96, %95 : vector<8x128xf32>
    %98 = arith.divf %96, %97 : vector<8x128xf32>
    %99 = math.tanh %93 : vector<8x128xf32>
    %100 = vector.extract_strided_slice %98 {offsets = [0, 0], sizes = [8, 32], strides = [1, 1]} : vector<8x128xf32> to vector<8x32xf32>
    %101 = vector.extract_strided_slice %98 {offsets = [0, 32], sizes = [8, 32], strides = [1, 1]} : vector<8x128xf32> to vector<8x32xf32>
    %102 = vector.extract_strided_slice %99 {offsets = [0, 64], sizes = [8, 32], strides = [1, 1]} : vector<8x128xf32> to vector<8x32xf32>
    %103 = vector.extract_strided_slice %98 {offsets = [0, 96], sizes = [8, 32], strides = [1, 1]} : vector<8x128xf32> to vector<8x32xf32>
    %104 = arith.mulf %101, %88 : vector<8x32xf32>
    %105 = arith.mulf %100, %102 : vector<8x32xf32>
    %106 = arith.addf %104, %105 : vector<8x32xf32>
    %107 = math.tanh %106 : vector<8x32xf32>
    %108 = arith.mulf %103, %107 : vector<8x32xf32>
    %109 = vector.extract_strided_slice %15 {offsets = [40, 0], sizes = [8, 128], strides = [1, 1]} : vector<64x128xf32> to vector<8x128xf32>
    %cst_19 = arith.constant dense<0.000000e+00> : vector<8x128xf32>
    %110 = tpu.matmul %108, %9, %cst_19 {dimension_numbers = #tpu.dot_dimension_numbers<[1], [0], [0], [1], [0, 0, 1, 1], [], []>} : vector<8x32xf32>, vector<32x128xf32>, vector<8x128xf32> -> vector<8x128xf32>
    %111 = arith.addf %109, %110 : vector<8x128xf32>
    %112 = arith.negf %111 : vector<8x128xf32>
    %113 = math.exp %112 : vector<8x128xf32>
    %cst_20 = arith.constant 1.000000e+00 : f32
    %114 = vector.broadcast %cst_20 : f32 to vector<8x128xf32>
    %115 = arith.addf %114, %113 : vector<8x128xf32>
    %116 = arith.divf %114, %115 : vector<8x128xf32>
    %117 = math.tanh %111 : vector<8x128xf32>
    %118 = vector.extract_strided_slice %116 {offsets = [0, 0], sizes = [8, 32], strides = [1, 1]} : vector<8x128xf32> to vector<8x32xf32>
    %119 = vector.extract_strided_slice %116 {offsets = [0, 32], sizes = [8, 32], strides = [1, 1]} : vector<8x128xf32> to vector<8x32xf32>
    %120 = vector.extract_strided_slice %117 {offsets = [0, 64], sizes = [8, 32], strides = [1, 1]} : vector<8x128xf32> to vector<8x32xf32>
    %121 = vector.extract_strided_slice %116 {offsets = [0, 96], sizes = [8, 32], strides = [1, 1]} : vector<8x128xf32> to vector<8x32xf32>
    %122 = arith.mulf %119, %106 : vector<8x32xf32>
    %123 = arith.mulf %118, %120 : vector<8x32xf32>
    %124 = arith.addf %122, %123 : vector<8x32xf32>
    %125 = math.tanh %124 : vector<8x32xf32>
    %126 = arith.mulf %121, %125 : vector<8x32xf32>
    %127 = vector.extract_strided_slice %15 {offsets = [48, 0], sizes = [8, 128], strides = [1, 1]} : vector<64x128xf32> to vector<8x128xf32>
    %cst_21 = arith.constant dense<0.000000e+00> : vector<8x128xf32>
    %128 = tpu.matmul %126, %9, %cst_21 {dimension_numbers = #tpu.dot_dimension_numbers<[1], [0], [0], [1], [0, 0, 1, 1], [], []>} : vector<8x32xf32>, vector<32x128xf32>, vector<8x128xf32> -> vector<8x128xf32>
    %129 = arith.addf %127, %128 : vector<8x128xf32>
    %130 = arith.negf %129 : vector<8x128xf32>
    %131 = math.exp %130 : vector<8x128xf32>
    %cst_22 = arith.constant 1.000000e+00 : f32
    %132 = vector.broadcast %cst_22 : f32 to vector<8x128xf32>
    %133 = arith.addf %132, %131 : vector<8x128xf32>
    %134 = arith.divf %132, %133 : vector<8x128xf32>
    %135 = math.tanh %129 : vector<8x128xf32>
    %136 = vector.extract_strided_slice %134 {offsets = [0, 0], sizes = [8, 32], strides = [1, 1]} : vector<8x128xf32> to vector<8x32xf32>
    %137 = vector.extract_strided_slice %134 {offsets = [0, 32], sizes = [8, 32], strides = [1, 1]} : vector<8x128xf32> to vector<8x32xf32>
    %138 = vector.extract_strided_slice %135 {offsets = [0, 64], sizes = [8, 32], strides = [1, 1]} : vector<8x128xf32> to vector<8x32xf32>
    %139 = vector.extract_strided_slice %134 {offsets = [0, 96], sizes = [8, 32], strides = [1, 1]} : vector<8x128xf32> to vector<8x32xf32>
    %140 = arith.mulf %137, %124 : vector<8x32xf32>
    %141 = arith.mulf %136, %138 : vector<8x32xf32>
    %142 = arith.addf %140, %141 : vector<8x32xf32>
    %143 = math.tanh %142 : vector<8x32xf32>
    %144 = arith.mulf %139, %143 : vector<8x32xf32>
    %145 = vector.extract_strided_slice %15 {offsets = [56, 0], sizes = [8, 128], strides = [1, 1]} : vector<64x128xf32> to vector<8x128xf32>
    %cst_23 = arith.constant dense<0.000000e+00> : vector<8x128xf32>
    %146 = tpu.matmul %144, %9, %cst_23 {dimension_numbers = #tpu.dot_dimension_numbers<[1], [0], [0], [1], [0, 0, 1, 1], [], []>} : vector<8x32xf32>, vector<32x128xf32>, vector<8x128xf32> -> vector<8x128xf32>
    %147 = arith.addf %145, %146 : vector<8x128xf32>
    %148 = arith.negf %147 : vector<8x128xf32>
    %149 = math.exp %148 : vector<8x128xf32>
    %cst_24 = arith.constant 1.000000e+00 : f32
    %150 = vector.broadcast %cst_24 : f32 to vector<8x128xf32>
    %151 = arith.addf %150, %149 : vector<8x128xf32>
    %152 = arith.divf %150, %151 : vector<8x128xf32>
    %153 = math.tanh %147 : vector<8x128xf32>
    %154 = vector.extract_strided_slice %152 {offsets = [0, 0], sizes = [8, 32], strides = [1, 1]} : vector<8x128xf32> to vector<8x32xf32>
    %155 = vector.extract_strided_slice %152 {offsets = [0, 32], sizes = [8, 32], strides = [1, 1]} : vector<8x128xf32> to vector<8x32xf32>
    %156 = vector.extract_strided_slice %153 {offsets = [0, 64], sizes = [8, 32], strides = [1, 1]} : vector<8x128xf32> to vector<8x32xf32>
    %157 = vector.extract_strided_slice %152 {offsets = [0, 96], sizes = [8, 32], strides = [1, 1]} : vector<8x128xf32> to vector<8x32xf32>
    %158 = arith.mulf %155, %142 : vector<8x32xf32>
    %159 = arith.mulf %154, %156 : vector<8x32xf32>
    %160 = arith.addf %158, %159 : vector<8x32xf32>
    %161 = math.tanh %160 : vector<8x32xf32>
    %162 = arith.mulf %157, %161 : vector<8x32xf32>
    %163 = tpu.concatenate %36, %54, %72, %90, %108, %126, %144, %162 in 0 : vector<8x32xf32>, vector<8x32xf32>, vector<8x32xf32>, vector<8x32xf32>, vector<8x32xf32>, vector<8x32xf32>, vector<8x32xf32>, vector<8x32xf32> -> vector<64x32xf32>
    %164 = vector.broadcast %6 : vector<64x1xf32> to vector<64x32xf32>
    %165 = arith.mulf %163, %164 : vector<64x32xf32>
    %c0_25 = arith.constant 0 : index
    %c0_26 = arith.constant 0 : index
    %166 = vector.load %arg2[%c0_25, %c0_26] : memref<33x32xf32, #tpu.memory_space<vmem>>, vector<32x32xf32>
    %c32_27 = arith.constant 32 : index
    %c0_28 = arith.constant 0 : index
    %167 = vector.load %arg2[%c32_27, %c0_28] : memref<33x32xf32, #tpu.memory_space<vmem>>, vector<1x32xf32>
    %cst_29 = arith.constant dense<0.000000e+00> : vector<64x32xf32>
    %168 = tpu.matmul %165, %166, %cst_29 {dimension_numbers = #tpu.dot_dimension_numbers<[1], [0], [0], [1], [0, 0, 1, 1], [], []>} : vector<64x32xf32>, vector<32x32xf32>, vector<64x32xf32> -> vector<64x32xf32>
    %169 = vector.broadcast %167 : vector<1x32xf32> to vector<64x32xf32>
    %170 = arith.addf %168, %169 : vector<64x32xf32>
    %c0_i32_30 = arith.constant 0 : i32
    %171 = vector.broadcast %c0_i32_30 : i32 to vector<64x1xi32>
    %172 = arith.cmpi ne, %1, %171 : vector<64x1xi32>
    %173 = arith.extui %172 : vector<64x1xi1> to vector<64x1xi32>
    %174 = arith.sitofp %173 : vector<64x1xi32> to vector<64x1xf32>
    %175 = tpu.iota {dimensions = array<i32: 1>} : vector<64x32xi32>
    %176 = vector.broadcast %1 : vector<64x1xi32> to vector<64x32xi32>
    %177 = arith.cmpi eq, %175, %176 : vector<64x32xi32>
    %178 = arith.extui %177 : vector<64x32xi1> to vector<64x32xi32>
    %179 = arith.sitofp %178 : vector<64x32xi32> to vector<64x32xf32>
    %180 = arith.mulf %179, %170 : vector<64x32xf32>
    %cst_31 = arith.constant dense<0.000000e+00> : vector<64xf32>
    %181 = vector.multi_reduction <add>, %180, %cst_31 [1] : vector<64x32xf32> to vector<64xf32>
    %182 = vector.shape_cast %181 : vector<64xf32> to vector<64x1xf32>
    %cst_32 = arith.constant dense<0xFF800000> : vector<64xf32>
    %183 = vector.multi_reduction <maximumf>, %170, %cst_32 [1] : vector<64x32xf32> to vector<64xf32>
    %184 = vector.shape_cast %183 : vector<64xf32> to vector<64x1xf32>
    %185 = vector.broadcast %184 : vector<64x1xf32> to vector<64x32xf32>
    %186 = arith.subf %170, %185 : vector<64x32xf32>
    %187 = math.exp %186 : vector<64x32xf32>
    %cst_33 = arith.constant dense<0.000000e+00> : vector<64xf32>
    %188 = vector.multi_reduction <add>, %187, %cst_33 [1] : vector<64x32xf32> to vector<64xf32>
    %189 = vector.shape_cast %188 : vector<64xf32> to vector<64x1xf32>
    %190 = math.log %189 : vector<64x1xf32>
    %191 = arith.addf %184, %190 : vector<64x1xf32>
    %192 = arith.subf %191, %182 : vector<64x1xf32>
    %193 = arith.mulf %192, %174 : vector<64x1xf32>
    %194 = vector.shape_cast %193 : vector<64x1xf32> to vector<1x64x1xf32>
    %cst_34 = arith.constant dense<0.000000e+00> : vector<1xf32>
    %195 = vector.multi_reduction <add>, %194, %cst_34 [1, 2] : vector<1x64x1xf32> to vector<1xf32>
    %196 = vector.shape_cast %195 : vector<1xf32> to vector<1x1x1xf32>
    %197 = vector.extract %196[0, 0, 0] : f32 from vector<1x1x1xf32>
    %198 = vector.broadcast %197 : f32 to vector<1x1xf32>
    %199 = vector.shape_cast %174 : vector<64x1xf32> to vector<1x64x1xf32>
    %cst_35 = arith.constant dense<0.000000e+00> : vector<1xf32>
    %200 = vector.multi_reduction <add>, %199, %cst_35 [1, 2] : vector<1x64x1xf32> to vector<1xf32>
    %201 = vector.shape_cast %200 : vector<1xf32> to vector<1x1x1xf32>
    %202 = vector.extract %201[0, 0, 0] : f32 from vector<1x1x1xf32>
    %203 = vector.broadcast %202 : f32 to vector<1x1xf32>
    %204 = arith.divf %198, %203 : vector<1x1xf32>
    %c0_36 = arith.constant 0 : index
    %c0_37 = arith.constant 0 : index
    %205 = vector.load %arg3[%c0_36, %c0_37] : memref<1x1xf32, #tpu.memory_space<vmem>>, vector<1x1xf32>
    tpu.vector_store %arg3[%c0_36, %c0_37], %204 {strides = array<i32>} : memref<1x1xf32, #tpu.memory_space<vmem>>, vector<1x1xf32>,
    return
  }
}

</mosaic_0001>

<llo_original>
// kernel: lang_reconstruction_loss.1
$region0: #{lang_reconstruction_loss.1}
  #allocation0 [shape = 'u32[]', space=smem, size = 0x4, offset = 0x4, fixed_abs, tag = 'smem constant byte address 0x4 - core index']
  #allocation1 [shape = 'u32[144,128]{1,0:T(1,128)}', space=vmem, size = 0x12000, scoped, tag = 'internal scratch']
  %s0 = inlined_call_operand.vmem [shape: s32[64,3], index: 0, kind: input, shape index: {}]
  %s1 = inlined_call_operand.vmem [shape: f32[72,128], index: 1, kind: input, shape index: {}]
  %s2 = inlined_call_operand.vmem [shape: f32[33,32], index: 2, kind: input, shape index: {}]
  %s3 = inlined_call_operand.hbm [shape: f32[1,1], index: 3, kind: output, shape index: {}]
  %s4 = sld [smem:[#allocation0]]
  $region22: #{lang_reconstruction_loss.1} parent=0
    _
  %s6 = ssub.s32 1, %s4
  %s7 = scalar_select 0, %s6, %s4
  $region1: #{lang_reconstruction_loss.1} parent=0
    #allocation2 [shape = 'u8[512]{0}', space=vmem, size = 0x400, scoped, tag = 'output window, operand 0, single buffered']
    #allocation3 [shape = 's32[1]{0}', space=sflag, size = 0x4, scoped, tag = 'scoped memory for lang_reconstruction_loss.1']
    %8 = vsyncpa [#allocation3], 0
    // Predicated region
    $region2: #{lang_reconstruction_loss.1} parent=1 // pred_check
      _
    $region3: #{lang_reconstruction_loss.1} parent=1 // pred_check_branch
      %10 = sbr.rel (0) target = $region5
    $region4: #{lang_reconstruction_loss.1} parent=1 // pred_region
      _
    $region5: #{lang_reconstruction_loss.1} parent=1 // pred_fallthru
      _
    // Predicated region
    $region6: #{lang_reconstruction_loss.1} parent=1 // pred_check
      _
    $region7: #{lang_reconstruction_loss.1} parent=1 // pred_check_branch
      %12 = sbr.rel (0) target = $region9
    $region8: #{lang_reconstruction_loss.1} parent=1 // pred_region
      _
    $region9: #{lang_reconstruction_loss.1} parent=1 // pred_fallthru
      _
    // Predicated region
    $region10: #{lang_reconstruction_loss.1} parent=1 // pred_check
      _
    $region11: #{lang_reconstruction_loss.1} parent=1 // pred_check_branch
      %14 = sbr.rel (0) target = $region13
    $region12: #{lang_reconstruction_loss.1} parent=1 // pred_region
      _
    $region13: #{lang_reconstruction_loss.1} parent=1 // pred_fallthru
      _
    %v15 = vld [vmem:[%s0] sm:$0xff]
    %v16 = vld [vmem:[%s0 + $0x8] sm:$0xff]
    %v17 = vld [vmem:[%s0 + $0x10] sm:$0xff]
    %v18 = vld [vmem:[%s0 + $0x18] sm:$0xff]
    %v19 = vld [vmem:[%s0 + $0x20] sm:$0xff]
    %v20 = vld [vmem:[%s0 + $0x28] sm:$0xff]
    %v21 = vld [vmem:[%s0 + $0x30] sm:$0xff]
    %v22 = vld [vmem:[%s0 + $0x38] sm:$0xff]
    %vm23 = vcmp.gt.s32.totalorder %v15, 0
    %vm24 = vcmp.gt.s32.totalorder %v16, 0
    %vm25 = vcmp.gt.s32.totalorder %v17, 0
    %vm26 = vcmp.gt.s32.totalorder %v18, 0
    %vm27 = vcmp.gt.s32.totalorder %v19, 0
    %vm28 = vcmp.gt.s32.totalorder %v20, 0
    %vm29 = vcmp.gt.s32.totalorder %v21, 0
    %vm30 = vcmp.gt.s32.totalorder %v22, 0
    %v31 = vsel %vm23, 1, 0
    %v32 = vsel %vm24, 1, 0
    %v33 = vsel %vm25, 1, 0
    %v34 = vsel %vm26, 1, 0
    %v35 = vsel %vm27, 1, 0
    %v36 = vsel %vm28, 1, 0
    %v37 = vsel %vm29, 1, 0
    %v38 = vsel %vm30, 1, 0
    %v39 = vcvt.s32.f32 %v31
    %v40 = vcvt.s32.f32 %v32
    %v41 = vcvt.s32.f32 %v33
    %v42 = vcvt.s32.f32 %v34
    %v43 = vcvt.s32.f32 %v35
    %v44 = vcvt.s32.f32 %v36
    %v45 = vcvt.s32.f32 %v37
    %v46 = vcvt.s32.f32 %v38
    %v47 = vld [vmem:[%s1] sm:$0xff]
    %v48 = vld [vmem:[%s1 + $0x8] sm:$0xff]
    %v49 = vld [vmem:[%s1 + $0x10] sm:$0xff]
    %v50 = vld [vmem:[%s1 + $0x18] sm:$0xff]
    %v51 = vld [vmem:[%s1 + $0x20] sm:$0xff]
    %v52 = vld [vmem:[%s1 + $0x28] sm:$0xff]
    %v53 = vld [vmem:[%s1 + $0x30] sm:$0xff]
    %v54 = vld [vmem:[%s1 + $0x38] sm:$0xff]
    %v55 = vld [vmem:[%s1 + $0x40] sm:$0xff]
    %v56 = vlaneseq
    %v57 = vand.u32 %v56, 127
    %58 = vset.pattern.permute.xlu0 0
    %59 = vperm.xlu0 %58, %v15
    %v60 = vpop.permute.xlu0 %59
    %61 = vset.pattern.permute.xlu0 0
    %62 = vperm.xlu0 %61, %v16
    %v63 = vpop.permute.xlu0 %62
    %64 = vset.pattern.permute.xlu0 0
    %65 = vperm.xlu0 %64, %v17
    %v66 = vpop.permute.xlu0 %65
    %67 = vset.pattern.permute.xlu0 0
    %68 = vperm.xlu0 %67, %v18
    %v69 = vpop.permute.xlu0 %68
    %70 = vset.pattern.permute.xlu0 0
    %71 = vperm.xlu0 %70, %v19
    %v72 = vpop.permute.xlu0 %71
    %73 = vset.pattern.permute.xlu0 0
    %74 = vperm.xlu0 %73, %v20
    %v75 = vpop.permute.xlu0 %74
    %76 = vset.pattern.permute.xlu0 0
    %77 = vperm.xlu0 %76, %v21
    %v78 = vpop.permute.xlu0 %77
    %79 = vset.pattern.permute.xlu0 0
    %80 = vperm.xlu0 %79, %v22
    %v81 = vpop.permute.xlu0 %80
    %vm82 = vcmp.eq.s32.totalorder %v57, %v60
    %vm83 = vcmp.eq.s32.totalorder %v57, %v63
    %vm84 = vcmp.eq.s32.totalorder %v57, %v66
    %vm85 = vcmp.eq.s32.totalorder %v57, %v69
    %vm86 = vcmp.eq.s32.totalorder %v57, %v72
    %vm87 = vcmp.eq.s32.totalorder %v57, %v75
    %vm88 = vcmp.eq.s32.totalorder %v57, %v78
    %vm89 = vcmp.eq.s32.totalorder %v57, %v81
    %v90 = vsel %vm82, 1, 0
    %v91 = vsel %vm83, 1, 0
    %v92 = vsel %vm84, 1, 0
    %v93 = vsel %vm85, 1, 0
    %v94 = vsel %vm86, 1, 0
    %v95 = vsel %vm87, 1, 0
    %v96 = vsel %vm88, 1, 0
    %v97 = vsel %vm89, 1, 0
    %v98 = vcvt.s32.f32 %v90
    %v99 = vcvt.s32.f32 %v91
    %v100 = vcvt.s32.f32 %v92
    %v101 = vcvt.s32.f32 %v93
    %v102 = vcvt.s32.f32 %v94
    %v103 = vcvt.s32.f32 %v95
    %v104 = vcvt.s32.f32 %v96
    %v105 = vcvt.s32.f32 %v97
    %vm106 = vcmask 261120
    %v108 = vsel %vm106, %v98, 0
    %v111 = vsel %vm106, %v99, 0
    %v114 = vsel %vm106, %v100, 0
    %v117 = vsel %vm106, %v101, 0
    %v120 = vsel %vm106, %v102, 0
    %v123 = vsel %vm106, %v103, 0
    %v126 = vsel %vm106, %v104, 0
    %v129 = vsel %vm106, %v105, 0
    %131 = vmatprep.subr.mxu0 0.0
    %132 = vmatpush1.msra.mxu0 %v47
    %133 = vmatprep.subr.mxu0 0.0
    %134 = vmatpush1.msra.mxu0 %v48
    %135 = vmatprep.subr.mxu0 0.0
    %136 = vmatpush1.msra.mxu0 %v49
    %137 = vmatprep.subr.mxu0 0.0
    %138 = vmatpush1.msra.mxu0 %v50
    %139 = vmatprep.subr.mxu0 0.0
    %140 = vmatpush1.msra.mxu0 0.0
    %141 = vmatprep.subr.mxu0 0.0
    %142 = vmatpush1.msra.mxu0 0.0
    %143 = vmatprep.subr.mxu0 0.0
    %144 = vmatpush1.msra.mxu0 0.0
    %145 = vmatprep.subr.mxu0 0.0
    %146 = vmatpush1.msra.mxu0 0.0
    %147 = vmatprep.subr.mxu0 0.0
    %148 = vmatpush1.msra.mxu0 0.0
    %149 = vmatprep.subr.mxu0 0.0
    %150 = vmatpush1.msra.mxu0 0.0
    %151 = vmatprep.subr.mxu0 0.0
    %152 = vmatpush1.msra.mxu0 0.0
    %153 = vmatprep.subr.mxu0 0.0
    %154 = vmatpush1.msra.mxu0 0.0
    %155 = vmatprep.subr.mxu0 0.0
    %156 = vmatpush1.msra.mxu0 0.0
    %157 = vmatprep.subr.mxu0 0.0
    %158 = vmatpush1.msra.mxu0 0.0
    %159 = vmatprep.subr.mxu0 0.0
    %160 = vmatpush1.msra.mxu0 0.0
    %161 = vmatprep.subr.mxu0 0.0
    %162 = vmatpush1.msra.mxu0 0.0
    %163 = vmatprep.subr.mxu0 0.0
    %164 = vmatpush1.msra.mxu0 0.0
    %165 = vmatprep.subr.mxu0 0.0
    %166 = vmatpush1.msra.mxu0 0.0
    %167 = vmatprep.subr.mxu0 0.0
    %168 = vmatpush1.msra.mxu0 0.0
    %169 = vmatprep.subr.mxu0 0.0
    %170 = vmatpush1.msra.mxu0 0.0
    %171 = vmatprep.subr.mxu0 0.0
    %172 = vmatpush1.msra.mxu0 0.0
    %173 = vmatprep.subr.mxu0 0.0
    %174 = vmatpush1.msra.mxu0 0.0
    %175 = vmatprep.subr.mxu0 0.0
    %176 = vmatpush1.msra.mxu0 0.0
    %177 = vmatprep.subr.mxu0 0.0
    %178 = vmatpush1.msra.mxu0 0.0
    %179 = vmatprep.subr.mxu0 0.0
    %180 = vmatpush1.msra.mxu0 0.0
    %181 = vmatprep.subr.mxu0 0.0
    %182 = vmatpush1.msra.mxu0 0.0
    %183 = vmatprep.subr.mxu0 0.0
    %184 = vmatpush1.msra.mxu0 0.0
    %185 = vmatprep.subr.mxu0 0.0
    %186 = vmatpush1.msra.mxu0 0.0
    %187 = vmatprep.subr.mxu0 0.0
    %188 = vmatpush1.msra.mxu0 0.0
    %189 = vmatprep.subr.mxu0 0.0
    %190 = vmatpush1.msra.mxu0 0.0
    %191 = vmatprep.subr.mxu0 0.0
    %192 = vmatpush1.msra.mxu0 0.0
    %193 = vmatprep.subr.mxu0 0.0
    %194 = vmatpush1.msra.mxu0 0.0
    %195 = vmatprep.mubr.f32.mxu0 0.0
    %196 = vmatmul.mubr.f32.gmra.mrb[0].mxu0 %v108
    %v197 = vpop.f32.mrb[0].mxu0
    %v198 = vadd.f32 0.0, %v197
    %v199 = vpop.f32.mrb[0].mxu0
    %200 = vmatprep.mubr.f32.mxu0 0.0
    %201 = vmatmul.mubr.f32.gmra.mrb[0].mxu0 %v111
    %v202 = vpop.f32.mrb[0].mxu0
    %v203 = vadd.f32 0.0, %v202
    %v204 = vpop.f32.mrb[0].mxu0
    %205 = vmatprep.mubr.f32.mxu0 0.0
    %206 = vmatmul.mubr.f32.gmra.mrb[0].mxu0 %v114
    %v207 = vpop.f32.mrb[0].mxu0
    %v208 = vadd.f32 0.0, %v207
    %v209 = vpop.f32.mrb[0].mxu0
    %210 = vmatprep.mubr.f32.mxu0 0.0
    %211 = vmatmul.mubr.f32.gmra.mrb[0].mxu0 %v117
    %v212 = vpop.f32.mrb[0].mxu0
    %v213 = vadd.f32 0.0, %v212
    %v214 = vpop.f32.mrb[0].mxu0
    %215 = vmatprep.mubr.f32.mxu0 0.0
    %216 = vmatmul.mubr.f32.gmra.mrb[0].mxu0 %v120
    %v217 = vpop.f32.mrb[0].mxu0
    %v218 = vadd.f32 0.0, %v217
    %v219 = vpop.f32.mrb[0].mxu0
    %220 = vmatprep.mubr.f32.mxu0 0.0
    %221 = vmatmul.mubr.f32.gmra.mrb[0].mxu0 %v123
    %v222 = vpop.f32.mrb[0].mxu0
    %v223 = vadd.f32 0.0, %v222
    %v224 = vpop.f32.mrb[0].mxu0
    %225 = vmatprep.mubr.f32.mxu0 0.0
    %226 = vmatmul.mubr.f32.gmra.mrb[0].mxu0 %v126
    %v227 = vpop.f32.mrb[0].mxu0
    %v228 = vadd.f32 0.0, %v227
    %v229 = vpop.f32.mrb[0].mxu0
    %230 = vmatprep.mubr.f32.mxu0 0.0
    %231 = vmatmul.mubr.f32.gmra.mrb[0].mxu0 %v129
    %v232 = vpop.f32.mrb[0].mxu0
    %v233 = vadd.f32 0.0, %v232
    %v234 = vpop.f32.mrb[0].mxu0
    %235 = vdwg.mxu0
    %v237 = vsel %vm106, 0.0, 0
    %239 = vmatprep.subr.mxu0 0.0
    %240 = vmatpush1.msra.mxu0 %v52
    %241 = vmatprep.subr.mxu0 0.0
    %242 = vmatpush1.msra.mxu0 %v53
    %243 = vmatprep.subr.mxu0 0.0
    %244 = vmatpush1.msra.mxu0 %v54
    %245 = vmatprep.subr.mxu0 0.0
    %246 = vmatpush1.msra.mxu0 %v55
    %247 = vmatprep.subr.mxu0 0.0
    %248 = vmatpush1.msra.mxu0 0.0
    %249 = vmatprep.subr.mxu0 0.0
    %250 = vmatpush1.msra.mxu0 0.0
    %251 = vmatprep.subr.mxu0 0.0
    %252 = vmatpush1.msra.mxu0 0.0
    %253 = vmatprep.subr.mxu0 0.0
    %254 = vmatpush1.msra.mxu0 0.0
    %255 = vmatprep.subr.mxu0 0.0
    %256 = vmatpush1.msra.mxu0 0.0
    %257 = vmatprep.subr.mxu0 0.0
    %258 = vmatpush1.msra.mxu0 0.0
    %259 = vmatprep.subr.mxu0 0.0
    %260 = vmatpush1.msra.mxu0 0.0
    %261 = vmatprep.subr.mxu0 0.0
    %262 = vmatpush1.msra.mxu0 0.0
    %263 = vmatprep.subr.mxu0 0.0
    %264 = vmatpush1.msra.mxu0 0.0
    %265 = vmatprep.subr.mxu0 0.0
    %266 = vmatpush1.msra.mxu0 0.0
    %267 = vmatprep.subr.mxu0 0.0
    %268 = vmatpush1.msra.mxu0 0.0
    %269 = vmatprep.subr.mxu0 0.0
    %270 = vmatpush1.msra.mxu0 0.0
    %271 = vmatprep.subr.mxu0 0.0
    %272 = vmatpush1.msra.mxu0 0.0
    %273 = vmatprep.subr.mxu0 0.0
    %274 = vmatpush1.msra.mxu0 0.0
    %275 = vmatprep.subr.mxu0 0.0
    %276 = vmatpush1.msra.mxu0 0.0
    %277 = vmatprep.subr.mxu0 0.0
    %278 = vmatpush1.msra.mxu0 0.0
    %279 = vmatprep.subr.mxu0 0.0
    %280 = vmatpush1.msra.mxu0 0.0
    %281 = vmatprep.subr.mxu0 0.0
    %282 = vmatpush1.msra.mxu0 0.0
    %283 = vmatprep.subr.mxu0 0.0
    %284 = vmatpush1.msra.mxu0 0.0
    %285 = vmatprep.subr.mxu0 0.0
    %286 = vmatpush1.msra.mxu0 0.0
    %287 = vmatprep.subr.mxu0 0.0
    %288 = vmatpush1.msra.mxu0 0.0
    %289 = vmatprep.subr.mxu0 0.0
    %290 = vmatpush1.msra.mxu0 0.0
    %291 = vmatprep.subr.mxu0 0.0
    %292 = vmatpush1.msra.mxu0 0.0
    %293 = vmatprep.subr.mxu0 0.0
    %294 = vmatpush1.msra.mxu0 0.0
    %295 = vmatprep.subr.mxu0 0.0
    %296 = vmatpush1.msra.mxu0 0.0
    %297 = vmatprep.subr.mxu0 0.0
    %298 = vmatpush1.msra.mxu0 0.0
    %299 = vmatprep.subr.mxu0 0.0
    %300 = vmatpush1.msra.mxu0 0.0
    %301 = vmatprep.subr.mxu0 0.0
    %302 = vmatpush1.msra.mxu0 0.0
    %303 = vmatprep.mubr.f32.mxu0 0.0
    %304 = vmatmul.mubr.f32.gmra.mrb[0].mxu0 %v237
    %v305 = vpop.f32.mrb[0].mxu0
    %v306 = vadd.f32 0.0, %v305
    %v307 = vpop.f32.mrb[0].mxu0
    %308 = vdwg.mxu0
    %v309 = vadd.f32 %v198, %v306
    %v310 = vadd.f32 %v309, %v51
    %v311 = vxor.u32 %v310, 2147483648
    %v312 = vmul.f32 %v311, 1.442695
    %v313 = vpow.pop %v312
    %v314 = vadd.f32 %v313, 1.0
    %v315 = vrcp.pop %v314
    %v316 = vmul.f32 1.0, %v315
    %v317 = vtanh.pop %v310
    %v318 = vmul.f32 %v316, 0.0
    %320 = vrot.lane.b32.xlu0 %v317, 64
    %v321 = vpop.permute.xlu0 %320
    %v323 = vmul.f32 %v316, %v321
    %325 = vrot.lane.b32.xlu0 %v323, 32
    %v326 = vpop.permute.xlu0 %325
    %v328 = vadd.f32 %v318, %v326
    %v329 = vtanh.pop %v328
    %331 = vrot.lane.b32.xlu0 %v329, 64
    %v332 = vpop.permute.xlu0 %331
    %v334 = vmul.f32 %v316, %v332
    %336 = vrot.lane.b32.xlu0 %v334, 32
    %v337 = vpop.permute.xlu0 %336
    %v338 = vsel %vm106, %v337, 0
    %340 = vmatprep.subr.mxu0 0.0
    %341 = vmatpush1.msra.mxu0 %v52
    %342 = vmatprep.subr.mxu0 0.0
    %343 = vmatpush1.msra.mxu0 %v53
    %344 = vmatprep.subr.mxu0 0.0
    %345 = vmatpush1.msra.mxu0 %v54
    %346 = vmatprep.subr.mxu0 0.0
    %347 = vmatpush1.msra.mxu0 %v55
    %348 = vmatprep.subr.mxu0 0.0
    %349 = vmatpush1.msra.mxu0 0.0
    %350 = vmatprep.subr.mxu0 0.0
    %351 = vmatpush1.msra.mxu0 0.0
    %352 = vmatprep.subr.mxu0 0.0
    %353 = vmatpush1.msra.mxu0 0.0
    %354 = vmatprep.subr.mxu0 0.0
    %355 = vmatpush1.msra.mxu0 0.0
    %356 = vmatprep.subr.mxu0 0.0
    %357 = vmatpush1.msra.mxu0 0.0
    %358 = vmatprep.subr.mxu0 0.0
    %359 = vmatpush1.msra.mxu0 0.0
    %360 = vmatprep.subr.mxu0 0.0
    %361 = vmatpush1.msra.mxu0 0.0
    %362 = vmatprep.subr.mxu0 0.0
    %363 = vmatpush1.msra.mxu0 0.0
    %364 = vmatprep.subr.mxu0 0.0
    %365 = vmatpush1.msra.mxu0 0.0
    %366 = vmatprep.subr.mxu0 0.0
    %367 = vmatpush1.msra.mxu0 0.0
    %368 = vmatprep.subr.mxu0 0.0
    %369 = vmatpush1.msra.mxu0 0.0
    %370 = vmatprep.subr.mxu0 0.0
    %371 = vmatpush1.msra.mxu0 0.0
    %372 = vmatprep.subr.mxu0 0.0
    %373 = vmatpush1.msra.mxu0 0.0
    %374 = vmatprep.subr.mxu0 0.0
    %375 = vmatpush1.msra.mxu0 0.0
    %376 = vmatprep.subr.mxu0 0.0
    %377 = vmatpush1.msra.mxu0 0.0
    %378 = vmatprep.subr.mxu0 0.0
    %379 = vmatpush1.msra.mxu0 0.0
    %380 = vmatprep.subr.mxu0 0.0
    %381 = vmatpush1.msra.mxu0 0.0
    %382 = vmatprep.subr.mxu0 0.0
    %383 = vmatpush1.msra.mxu0 0.0
    %384 = vmatprep.subr.mxu0 0.0
    %385 = vmatpush1.msra.mxu0 0.0
    %386 = vmatprep.subr.mxu0 0.0
    %387 = vmatpush1.msra.mxu0 0.0
    %388 = vmatprep.subr.mxu0 0.0
    %389 = vmatpush1.msra.mxu0 0.0
    %390 = vmatprep.subr.mxu0 0.0
    %391 = vmatpush1.msra.mxu0 0.0
    %392 = vmatprep.subr.mxu0 0.0
    %393 = vmatpush1.msra.mxu0 0.0
    %394 = vmatprep.subr.mxu0 0.0
    %395 = vmatpush1.msra.mxu0 0.0
    %396 = vmatprep.subr.mxu0 0.0
    %397 = vmatpush1.msra.mxu0 0.0
    %398 = vmatprep.subr.mxu0 0.0
    %399 = vmatpush1.msra.mxu0 0.0
    %400 = vmatprep.subr.mxu0 0.0
    %401 = vmatpush1.msra.mxu0 0.0
    %402 = vmatprep.subr.mxu0 0.0
    %403 = vmatpush1.msra.mxu0 0.0
    %404 = vmatprep.mubr.f32.mxu0 0.0
    %405 = vmatmul.mubr.f32.gmra.mrb[0].mxu0 %v338
    %v406 = vpop.f32.mrb[0].mxu0
    %v407 = vadd.f32 0.0, %v406
    %v408 = vpop.f32.mrb[0].mxu0
    %409 = vdwg.mxu0
    %v410 = vadd.f32 %v203, %v407
    %v411 = vxor.u32 %v410, 2147483648
    %v412 = vmul.f32 %v411, 1.442695
    %v413 = vpow.pop %v412
    %v414 = vadd.f32 %v413, 1.0
    %v415 = vrcp.pop %v414
    %v416 = vmul.f32 1.0, %v415
    %v417 = vtanh.pop %v410
    %v418 = vmul.f32 %v416, %v328
    %420 = vrot.lane.b32.xlu0 %v417, 64
    %v421 = vpop.permute.xlu0 %420
    %v423 = vmul.f32 %v416, %v421
    %425 = vrot.lane.b32.xlu0 %v423, 32
    %v426 = vpop.permute.xlu0 %425
    %v428 = vadd.f32 %v418, %v426
    %v429 = vtanh.pop %v428
    %431 = vrot.lane.b32.xlu0 %v429, 64
    %v432 = vpop.permute.xlu0 %431
    %v434 = vmul.f32 %v416, %v432
    %436 = vrot.lane.b32.xlu0 %v434, 32
    %v437 = vpop.permute.xlu0 %436
    %v438 = vsel %vm106, %v437, 0
    %440 = vmatprep.subr.mxu0 0.0
    %441 = vmatpush1.msra.mxu0 %v52
    %442 = vmatprep.subr.mxu0 0.0
    %443 = vmatpush1.msra.mxu0 %v53
    %444 = vmatprep.subr.mxu0 0.0
    %445 = vmatpush1.msra.mxu0 %v54
    %446 = vmatprep.subr.mxu0 0.0
    %447 = vmatpush1.msra.mxu0 %v55
    %448 = vmatprep.subr.mxu0 0.0
    %449 = vmatpush1.msra.mxu0 0.0
    %450 = vmatprep.subr.mxu0 0.0
    %451 = vmatpush1.msra.mxu0 0.0
    %452 = vmatprep.subr.mxu0 0.0
    %453 = vmatpush1.msra.mxu0 0.0
    %454 = vmatprep.subr.mxu0 0.0
    %455 = vmatpush1.msra.mxu0 0.0
    %456 = vmatprep.subr.mxu0 0.0
    %457 = vmatpush1.msra.mxu0 0.0
    %458 = vmatprep.subr.mxu0 0.0
    %459 = vmatpush1.msra.mxu0 0.0
    %460 = vmatprep.subr.mxu0 0.0
    %461 = vmatpush1.msra.mxu0 0.0
    %462 = vmatprep.subr.mxu0 0.0
    %463 = vmatpush1.msra.mxu0 0.0
    %464 = vmatprep.subr.mxu0 0.0
    %465 = vmatpush1.msra.mxu0 0.0
    %466 = vmatprep.subr.mxu0 0.0
    %467 = vmatpush1.msra.mxu0 0.0
    %468 = vmatprep.subr.mxu0 0.0
    %469 = vmatpush1.msra.mxu0 0.0
    %470 = vmatprep.subr.mxu0 0.0
    %471 = vmatpush1.msra.mxu0 0.0
    %472 = vmatprep.subr.mxu0 0.0
    %473 = vmatpush1.msra.mxu0 0.0
    %474 = vmatprep.subr.mxu0 0.0
    %475 = vmatpush1.msra.mxu0 0.0
    %476 = vmatprep.subr.mxu0 0.0
    %477 = vmatpush1.msra.mxu0 0.0
    %478 = vmatprep.subr.mxu0 0.0
    %479 = vmatpush1.msra.mxu0 0.0
    %480 = vmatprep.subr.mxu0 0.0
    %481 = vmatpush1.msra.mxu0 0.0
    %482 = vmatprep.subr.mxu0 0.0
    %483 = vmatpush1.msra.mxu0 0.0
    %484 = vmatprep.subr.mxu0 0.0
    %485 = vmatpush1.msra.mxu0 0.0
    %486 = vmatprep.subr.mxu0 0.0
    %487 = vmatpush1.msra.mxu0 0.0
    %488 = vmatprep.subr.mxu0 0.0
    %489 = vmatpush1.msra.mxu0 0.0
    %490 = vmatprep.subr.mxu0 0.0
    %491 = vmatpush1.msra.mxu0 0.0
    %492 = vmatprep.subr.mxu0 0.0
    %493 = vmatpush1.msra.mxu0 0.0
    %494 = vmatprep.subr.mxu0 0.0
    %495 = vmatpush1.msra.mxu0 0.0
    %496 = vmatprep.subr.mxu0 0.0
    %497 = vmatpush1.msra.mxu0 0.0
    %498 = vmatprep.subr.mxu0 0.0
    %499 = vmatpush1.msra.mxu0 0.0
    %500 = vmatprep.subr.mxu0 0.0
    %501 = vmatpush1.msra.mxu0 0.0
    %502 = vmatprep.subr.mxu0 0.0
    %503 = vmatpush1.msra.mxu0 0.0
    %504 = vmatprep.mubr.f32.mxu0 0.0
    %505 = vmatmul.mubr.f32.gmra.mrb[0].mxu0 %v438
    %v506 = vpop.f32.mrb[0].mxu0
    %v507 = vadd.f32 0.0, %v506
    %v508 = vpop.f32.mrb[0].mxu0
    %509 = vdwg.mxu0
    %v510 = vadd.f32 %v208, %v507
    %v511 = vxor.u32 %v510, 2147483648
    %v512 = vmul.f32 %v511, 1.442695
    %v513 = vpow.pop %v512
    %v514 = vadd.f32 %v513, 1.0
    %v515 = vrcp.pop %v514
    %v516 = vmul.f32 1.0, %v515
    %v517 = vtanh.pop %v510
    %v518 = vmul.f32 %v516, %v428
    %520 = vrot.lane.b32.xlu0 %v517, 64
    %v521 = vpop.permute.xlu0 %520
    %v523 = vmul.f32 %v516, %v521
    %525 = vrot.lane.b32.xlu0 %v523, 32
    %v526 = vpop.permute.xlu0 %525
    %v528 = vadd.f32 %v518, %v526
    %v529 = vtanh.pop %v528
    %531 = vrot.lane.b32.xlu0 %v529, 64
    %v532 = vpop.permute.xlu0 %531
    %v534 = vmul.f32 %v516, %v532
    %536 = vrot.lane.b32.xlu0 %v534, 32
    %v537 = vpop.permute.xlu0 %536
    %v538 = vsel %vm106, %v537, 0
    %540 = vmatprep.subr.mxu0 0.0
    %541 = vmatpush1.msra.mxu0 %v52
    %542 = vmatprep.subr.mxu0 0.0
    %543 = vmatpush1.msra.mxu0 %v53
    %544 = vmatprep.subr.mxu0 0.0
    %545 = vmatpush1.msra.mxu0 %v54
    %546 = vmatprep.subr.mxu0 0.0
    %547 = vmatpush1.msra.mxu0 %v55
    %548 = vmatprep.subr.mxu0 0.0
    %549 = vmatpush1.msra.mxu0 0.0
    %550 = vmatprep.subr.mxu0 0.0
    %551 = vmatpush1.msra.mxu0 0.0
    %552 = vmatprep.subr.mxu0 0.0
    %553 = vmatpush1.msra.mxu0 0.0
    %554 = vmatprep.subr.mxu0 0.0
    %555 = vmatpush1.msra.mxu0 0.0
    %556 = vmatprep.subr.mxu0 0.0
    %557 = vmatpush1.msra.mxu0 0.0
    %558 = vmatprep.subr.mxu0 0.0
    %559 = vmatpush1.msra.mxu0 0.0
    %560 = vmatprep.subr.mxu0 0.0
    %561 = vmatpush1.msra.mxu0 0.0
    %562 = vmatprep.subr.mxu0 0.0
    %563 = vmatpush1.msra.mxu0 0.0
    %564 = vmatprep.subr.mxu0 0.0
    %565 = vmatpush1.msra.mxu0 0.0
    %566 = vmatprep.subr.mxu0 0.0
    %567 = vmatpush1.msra.mxu0 0.0
    %568 = vmatprep.subr.mxu0 0.0
    %569 = vmatpush1.msra.mxu0 0.0
    %570 = vmatprep.subr.mxu0 0.0
    %571 = vmatpush1.msra.mxu0 0.0
    %572 = vmatprep.subr.mxu0 0.0
    %573 = vmatpush1.msra.mxu0 0.0
    %574 = vmatprep.subr.mxu0 0.0
    %575 = vmatpush1.msra.mxu0 0.0
    %576 = vmatprep.subr.mxu0 0.0
    %577 = vmatpush1.msra.mxu0 0.0
    %578 = vmatprep.subr.mxu0 0.0
    %579 = vmatpush1.msra.mxu0 0.0
    %580 = vmatprep.subr.mxu0 0.0
    %581 = vmatpush1.msra.mxu0 0.0
    %582 = vmatprep.subr.mxu0 0.0
    %583 = vmatpush1.msra.mxu0 0.0
    %584 = vmatprep.subr.mxu0 0.0
    %585 = vmatpush1.msra.mxu0 0.0
    %586 = vmatprep.subr.mxu0 0.0
    %587 = vmatpush1.msra.mxu0 0.0
    %588 = vmatprep.subr.mxu0 0.0
    %589 = vmatpush1.msra.mxu0 0.0
    %590 = vmatprep.subr.mxu0 0.0
    %591 = vmatpush1.msra.mxu0 0.0
    %592 = vmatprep.subr.mxu0 0.0
    %593 = vmatpush1.msra.mxu0 0.0
    %594 = vmatprep.subr.mxu0 0.0
    %595 = vmatpush1.msra.mxu0 0.0
    %596 = vmatprep.subr.mxu0 0.0
    %597 = vmatpush1.msra.mxu0 0.0
    %598 = vmatprep.subr.mxu0 0.0
    %599 = vmatpush1.msra.mxu0 0.0
    %600 = vmatprep.subr.mxu0 0.0
    %601 = vmatpush1.msra.mxu0 0.0
    %602 = vmatprep.subr.mxu0 0.0
    %603 = vmatpush1.msra.mxu0 0.0
    %604 = vmatprep.mubr.f32.mxu0 0.0
    %605 = vmatmul.mubr.f32.gmra.mrb[0].mxu0 %v538
    %v606 = vpop.f32.mrb[0].mxu0
    %v607 = vadd.f32 0.0, %v606
    %v608 = vpop.f32.mrb[0].mxu0
    %609 = vdwg.mxu0
    %v610 = vadd.f32 %v213, %v607
    %v611 = vxor.u32 %v610, 2147483648
    %v612 = vmul.f32 %v611, 1.442695
    %v613 = vpow.pop %v612
    %v614 = vadd.f32 %v613, 1.0
    %v615 = vrcp.pop %v614
    %v616 = vmul.f32 1.0, %v615
    %v617 = vtanh.pop %v610
    %v618 = vmul.f32 %v616, %v528
    %620 = vrot.lane.b32.xlu0 %v617, 64
    %v621 = vpop.permute.xlu0 %620
    %v623 = vmul.f32 %v616, %v621
    %625 = vrot.lane.b32.xlu0 %v623, 32
    %v626 = vpop.permute.xlu0 %625
    %v628 = vadd.f32 %v618, %v626
    %v629 = vtanh.pop %v628
    %631 = vrot.lane.b32.xlu0 %v629, 64
    %v632 = vpop.permute.xlu0 %631
    %v634 = vmul.f32 %v616, %v632
    %636 = vrot.lane.b32.xlu0 %v634, 32
    %v637 = vpop.permute.xlu0 %636
    %v638 = vsel %vm106, %v637, 0
    %640 = vmatprep.subr.mxu0 0.0
    %641 = vmatpush1.msra.mxu0 %v52
    %642 = vmatprep.subr.mxu0 0.0
    %643 = vmatpush1.msra.mxu0 %v53
    %644 = vmatprep.subr.mxu0 0.0
    %645 = vmatpush1.msra.mxu0 %v54
    %646 = vmatprep.subr.mxu0 0.0
    %647 = vmatpush1.msra.mxu0 %v55
    %648 = vmatprep.subr.mxu0 0.0
    %649 = vmatpush1.msra.mxu0 0.0
    %650 = vmatprep.subr.mxu0 0.0
    %651 = vmatpush1.msra.mxu0 0.0
    %652 = vmatprep.subr.mxu0 0.0
    %653 = vmatpush1.msra.mxu0 0.0
    %654 = vmatprep.subr.mxu0 0.0
    %655 = vmatpush1.msra.mxu0 0.0
    %656 = vmatprep.subr.mxu0 0.0
    %657 = vmatpush1.msra.mxu0 0.0
    %658 = vmatprep.subr.mxu0 0.0
    %659 = vmatpush1.msra.mxu0 0.0
    %660 = vmatprep.subr.mxu0 0.0
    %661 = vmatpush1.msra.mxu0 0.0
    %662 = vmatprep.subr.mxu0 0.0
    %663 = vmatpush1.msra.mxu0 0.0
    %664 = vmatprep.subr.mxu0 0.0
    %665 = vmatpush1.msra.mxu0 0.0
    %666 = vmatprep.subr.mxu0 0.0
    %667 = vmatpush1.msra.mxu0 0.0
    %668 = vmatprep.subr.mxu0 0.0
    %669 = vmatpush1.msra.mxu0 0.0
    %670 = vmatprep.subr.mxu0 0.0
    %671 = vmatpush1.msra.mxu0 0.0
    %672 = vmatprep.subr.mxu0 0.0
    %673 = vmatpush1.msra.mxu0 0.0
    %674 = vmatprep.subr.mxu0 0.0
    %675 = vmatpush1.msra.mxu0 0.0
    %676 = vmatprep.subr.mxu0 0.0
    %677 = vmatpush1.msra.mxu0 0.0
    %678 = vmatprep.subr.mxu0 0.0
    %679 = vmatpush1.msra.mxu0 0.0
    %680 = vmatprep.subr.mxu0 0.0
    %681 = vmatpush1.msra.mxu0 0.0
    %682 = vmatprep.subr.mxu0 0.0
    %683 = vmatpush1.msra.mxu0 0.0
    %684 = vmatprep.subr.mxu0 0.0
    %685 = vmatpush1.msra.mxu0 0.0
    %686 = vmatprep.subr.mxu0 0.0
    %687 = vmatpush1.msra.mxu0 0.0
    %688 = vmatprep.subr.mxu0 0.0
    %689 = vmatpush1.msra.mxu0 0.0
    %690 = vmatprep.subr.mxu0 0.0
    %691 = vmatpush1.msra.mxu0 0.0
    %692 = vmatprep.subr.mxu0 0.0
    %693 = vmatpush1.msra.mxu0 0.0
    %694 = vmatprep.subr.mxu0 0.0
    %695 = vmatpush1.msra.mxu0 0.0
    %696 = vmatprep.subr.mxu0 0.0
    %697 = vmatpush1.msra.mxu0 0.0
    %698 = vmatprep.subr.mxu0 0.0
    %699 = vmatpush1.msra.mxu0 0.0
    %700 = vmatprep.subr.mxu0 0.0
    %701 = vmatpush1.msra.mxu0 0.0
    %702 = vmatprep.subr.mxu0 0.0
    %703 = vmatpush1.msra.mxu0 0.0
    %704 = vmatprep.mubr.f32.mxu0 0.0
    %705 = vmatmul.mubr.f32.gmra.mrb[0].mxu0 %v638
    %v706 = vpop.f32.mrb[0].mxu0
    %v707 = vadd.f32 0.0, %v706
    %v708 = vpop.f32.mrb[0].mxu0
    %709 = vdwg.mxu0
    %v710 = vadd.f32 %v218, %v707
    %v711 = vxor.u32 %v710, 2147483648
    %v712 = vmul.f32 %v711, 1.442695
    %v713 = vpow.pop %v712
    %v714 = vadd.f32 %v713, 1.0
    %v715 = vrcp.pop %v714
    %v716 = vmul.f32 1.0, %v715
    %v717 = vtanh.pop %v710
    %v718 = vmul.f32 %v716, %v628
    %720 = vrot.lane.b32.xlu0 %v717, 64
    %v721 = vpop.permute.xlu0 %720
    %v723 = vmul.f32 %v716, %v721
    %725 = vrot.lane.b32.xlu0 %v723, 32
    %v726 = vpop.permute.xlu0 %725
    %v728 = vadd.f32 %v718, %v726
    %v729 = vtanh.pop %v728
    %731 = vrot.lane.b32.xlu0 %v729, 64
    %v732 = vpop.permute.xlu0 %731
    %v734 = vmul.f32 %v716, %v732
    %736 = vrot.lane.b32.xlu0 %v734, 32
    %v737 = vpop.permute.xlu0 %736
    %v738 = vsel %vm106, %v737, 0
    %740 = vmatprep.subr.mxu0 0.0
    %741 = vmatpush1.msra.mxu0 %v52
    %742 = vmatprep.subr.mxu0 0.0
    %743 = vmatpush1.msra.mxu0 %v53
    %744 = vmatprep.subr.mxu0 0.0
    %745 = vmatpush1.msra.mxu0 %v54
    %746 = vmatprep.subr.mxu0 0.0
    %747 = vmatpush1.msra.mxu0 %v55
    %748 = vmatprep.subr.mxu0 0.0
    %749 = vmatpush1.msra.mxu0 0.0
    %750 = vmatprep.subr.mxu0 0.0
    %751 = vmatpush1.msra.mxu0 0.0
    %752 = vmatprep.subr.mxu0 0.0
    %753 = vmatpush1.msra.mxu0 0.0
    %754 = vmatprep.subr.mxu0 0.0
    %755 = vmatpush1.msra.mxu0 0.0
    %756 = vmatprep.subr.mxu0 0.0
    %757 = vmatpush1.msra.mxu0 0.0
    %758 = vmatprep.subr.mxu0 0.0
    %759 = vmatpush1.msra.mxu0 0.0
    %760 = vmatprep.subr.mxu0 0.0
    %761 = vmatpush1.msra.mxu0 0.0
    %762 = vmatprep.subr.mxu0 0.0
    %763 = vmatpush1.msra.mxu0 0.0
    %764 = vmatprep.subr.mxu0 0.0
    %765 = vmatpush1.msra.mxu0 0.0
    %766 = vmatprep.subr.mxu0 0.0
    %767 = vmatpush1.msra.mxu0 0.0
    %768 = vmatprep.subr.mxu0 0.0
    %769 = vmatpush1.msra.mxu0 0.0
    %770 = vmatprep.subr.mxu0 0.0
    %771 = vmatpush1.msra.mxu0 0.0
    %772 = vmatprep.subr.mxu0 0.0
    %773 = vmatpush1.msra.mxu0 0.0
    %774 = vmatprep.subr.mxu0 0.0
    %775 = vmatpush1.msra.mxu0 0.0
    %776 = vmatprep.subr.mxu0 0.0
    %777 = vmatpush1.msra.mxu0 0.0
    %778 = vmatprep.subr.mxu0 0.0
    %779 = vmatpush1.msra.mxu0 0.0
    %780 = vmatprep.subr.mxu0 0.0
    %781 = vmatpush1.msra.mxu0 0.0
    %782 = vmatprep.subr.mxu0 0.0
    %783 = vmatpush1.msra.mxu0 0.0
    %784 = vmatprep.subr.mxu0 0.0
    %785 = vmatpush1.msra.mxu0 0.0
    %786 = vmatprep.subr.mxu0 0.0
    %787 = vmatpush1.msra.mxu0 0.0
    %788 = vmatprep.subr.mxu0 0.0
    %789 = vmatpush1.msra.mxu0 0.0
    %790 = vmatprep.subr.mxu0 0.0
    %791 = vmatpush1.msra.mxu0 0.0
    %792 = vmatprep.subr.mxu0 0.0
    %793 = vmatpush1.msra.mxu0 0.0
    %794 = vmatprep.subr.mxu0 0.0
    %795 = vmatpush1.msra.mxu0 0.0
    %796 = vmatprep.subr.mxu0 0.0
    %797 = vmatpush1.msra.mxu0 0.0
    %798 = vmatprep.subr.mxu0 0.0
    %799 = vmatpush1.msra.mxu0 0.0
    %800 = vmatprep.subr.mxu0 0.0
    %801 = vmatpush1.msra.mxu0 0.0
    %802 = vmatprep.subr.mxu0 0.0
    %803 = vmatpush1.msra.mxu0 0.0
    %804 = vmatprep.mubr.f32.mxu0 0.0
    %805 = vmatmul.mubr.f32.gmra.mrb[0].mxu0 %v738
    %v806 = vpop.f32.mrb[0].mxu0
    %v807 = vadd.f32 0.0, %v806
    %v808 = vpop.f32.mrb[0].mxu0
    %809 = vdwg.mxu0
    %v810 = vadd.f32 %v223, %v807
    %v811 = vxor.u32 %v810, 2147483648
    %v812 = vmul.f32 %v811, 1.442695
    %v813 = vpow.pop %v812
    %v814 = vadd.f32 %v813, 1.0
    %v815 = vrcp.pop %v814
    %v816 = vmul.f32 1.0, %v815
    %v817 = vtanh.pop %v810
    %v818 = vmul.f32 %v816, %v728
    %820 = vrot.lane.b32.xlu0 %v817, 64
    %v821 = vpop.permute.xlu0 %820
    %v823 = vmul.f32 %v816, %v821
    %825 = vrot.lane.b32.xlu0 %v823, 32
    %v826 = vpop.permute.xlu0 %825
    %v828 = vadd.f32 %v818, %v826
    %v829 = vtanh.pop %v828
    %831 = vrot.lane.b32.xlu0 %v829, 64
    %v832 = vpop.permute.xlu0 %831
    %v834 = vmul.f32 %v816, %v832
    %836 = vrot.lane.b32.xlu0 %v834, 32
    %v837 = vpop.permute.xlu0 %836
    %v838 = vsel %vm106, %v837, 0
    %840 = vmatprep.subr.mxu0 0.0
    %841 = vmatpush1.msra.mxu0 %v52
    %842 = vmatprep.subr.mxu0 0.0
    %843 = vmatpush1.msra.mxu0 %v53
    %844 = vmatprep.subr.mxu0 0.0
    %845 = vmatpush1.msra.mxu0 %v54
    %846 = vmatprep.subr.mxu0 0.0
    %847 = vmatpush1.msra.mxu0 %v55
    %848 = vmatprep.subr.mxu0 0.0
    %849 = vmatpush1.msra.mxu0 0.0
    %850 = vmatprep.subr.mxu0 0.0
    %851 = vmatpush1.msra.mxu0 0.0
    %852 = vmatprep.subr.mxu0 0.0
    %853 = vmatpush1.msra.mxu0 0.0
    %854 = vmatprep.subr.mxu0 0.0
    %855 = vmatpush1.msra.mxu0 0.0
    %856 = vmatprep.subr.mxu0 0.0
    %857 = vmatpush1.msra.mxu0 0.0
    %858 = vmatprep.subr.mxu0 0.0
    %859 = vmatpush1.msra.mxu0 0.0
    %860 = vmatprep.subr.mxu0 0.0
    %861 = vmatpush1.msra.mxu0 0.0
    %862 = vmatprep.subr.mxu0 0.0
    %863 = vmatpush1.msra.mxu0 0.0
    %864 = vmatprep.subr.mxu0 0.0
    %865 = vmatpush1.msra.mxu0 0.0
    %866 = vmatprep.subr.mxu0 0.0
    %867 = vmatpush1.msra.mxu0 0.0
    %868 = vmatprep.subr.mxu0 0.0
    %869 = vmatpush1.msra.mxu0 0.0
    %870 = vmatprep.subr.mxu0 0.0
    %871 = vmatpush1.msra.mxu0 0.0
    %872 = vmatprep.subr.mxu0 0.0
    %873 = vmatpush1.msra.mxu0 0.0
    %874 = vmatprep.subr.mxu0 0.0
    %875 = vmatpush1.msra.mxu0 0.0
    %876 = vmatprep.subr.mxu0 0.0
    %877 = vmatpush1.msra.mxu0 0.0
    %878 = vmatprep.subr.mxu0 0.0
    %879 = vmatpush1.msra.mxu0 0.0
    %880 = vmatprep.subr.mxu0 0.0
    %881 = vmatpush1.msra.mxu0 0.0
    %882 = vmatprep.subr.mxu0 0.0
    %883 = vmatpush1.msra.mxu0 0.0
    %884 = vmatprep.subr.mxu0 0.0
    %885 = vmatpush1.msra.mxu0 0.0
    %886 = vmatprep.subr.mxu0 0.0
    %887 = vmatpush1.msra.mxu0 0.0
    %888 = vmatprep.subr.mxu0 0.0
    %889 = vmatpush1.msra.mxu0 0.0
    %890 = vmatprep.subr.mxu0 0.0
    %891 = vmatpush1.msra.mxu0 0.0
    %892 = vmatprep.subr.mxu0 0.0
    %893 = vmatpush1.msra.mxu0 0.0
    %894 = vmatprep.subr.mxu0 0.0
    %895 = vmatpush1.msra.mxu0 0.0
    %896 = vmatprep.subr.mxu0 0.0
    %897 = vmatpush1.msra.mxu0 0.0
    %898 = vmatprep.subr.mxu0 0.0
    %899 = vmatpush1.msra.mxu0 0.0
    %900 = vmatprep.subr.mxu0 0.0
    %901 = vmatpush1.msra.mxu0 0.0
    %902 = vmatprep.subr.mxu0 0.0
    %903 = vmatpush1.msra.mxu0 0.0
    %904 = vmatprep.mubr.f32.mxu0 0.0
    %905 = vmatmul.mubr.f32.gmra.mrb[0].mxu0 %v838
    %v906 = vpop.f32.mrb[0].mxu0
    %v907 = vadd.f32 0.0, %v906
    %v908 = vpop.f32.mrb[0].mxu0
    %909 = vdwg.mxu0
    %v910 = vadd.f32 %v228, %v907
    %v911 = vxor.u32 %v910, 2147483648
    %v912 = vmul.f32 %v911, 1.442695
    %v913 = vpow.pop %v912
    %v914 = vadd.f32 %v913, 1.0
    %v915 = vrcp.pop %v914
    %v916 = vmul.f32 1.0, %v915
    %v917 = vtanh.pop %v910
    %v918 = vmul.f32 %v916, %v828
    %920 = vrot.lane.b32.xlu0 %v917, 64
    %v921 = vpop.permute.xlu0 %920
    %v923 = vmul.f32 %v916, %v921
    %925 = vrot.lane.b32.xlu0 %v923, 32
    %v926 = vpop.permute.xlu0 %925
    %v928 = vadd.f32 %v918, %v926
    %v929 = vtanh.pop %v928
    %931 = vrot.lane.b32.xlu0 %v929, 64
    %v932 = vpop.permute.xlu0 %931
    %v934 = vmul.f32 %v916, %v932
    %936 = vrot.lane.b32.xlu0 %v934, 32
    %v937 = vpop.permute.xlu0 %936
    %v938 = vsel %vm106, %v937, 0
    %940 = vmatprep.subr.mxu0 0.0
    %941 = vmatpush1.msra.mxu0 %v52
    %942 = vmatprep.subr.mxu0 0.0
    %943 = vmatpush1.msra.mxu0 %v53
    %944 = vmatprep.subr.mxu0 0.0
    %945 = vmatpush1.msra.mxu0 %v54
    %946 = vmatprep.subr.mxu0 0.0
    %947 = vmatpush1.msra.mxu0 %v55
    %948 = vmatprep.subr.mxu0 0.0
    %949 = vmatpush1.msra.mxu0 0.0
    %950 = vmatprep.subr.mxu0 0.0
    %951 = vmatpush1.msra.mxu0 0.0
    %952 = vmatprep.subr.mxu0 0.0
    %953 = vmatpush1.msra.mxu0 0.0
    %954 = vmatprep.subr.mxu0 0.0
    %955 = vmatpush1.msra.mxu0 0.0
    %956 = vmatprep.subr.mxu0 0.0
    %957 = vmatpush1.msra.mxu0 0.0
    %958 = vmatprep.subr.mxu0 0.0
    %959 = vmatpush1.msra.mxu0 0.0
    %960 = vmatprep.subr.mxu0 0.0
    %961 = vmatpush1.msra.mxu0 0.0
    %962 = vmatprep.subr.mxu0 0.0
    %963 = vmatpush1.msra.mxu0 0.0
    %964 = vmatprep.subr.mxu0 0.0
    %965 = vmatpush1.msra.mxu0 0.0
    %966 = vmatprep.subr.mxu0 0.0
    %967 = vmatpush1.msra.mxu0 0.0
    %968 = vmatprep.subr.mxu0 0.0
    %969 = vmatpush1.msra.mxu0 0.0
    %970 = vmatprep.subr.mxu0 0.0
    %971 = vmatpush1.msra.mxu0 0.0
    %972 = vmatprep.subr.mxu0 0.0
    %973 = vmatpush1.msra.mxu0 0.0
    %974 = vmatprep.subr.mxu0 0.0
    %975 = vmatpush1.msra.mxu0 0.0
    %976 = vmatprep.subr.mxu0 0.0
    %977 = vmatpush1.msra.mxu0 0.0
    %978 = vmatprep.subr.mxu0 0.0
    %979 = vmatpush1.msra.mxu0 0.0
    %980 = vmatprep.subr.mxu0 0.0
    %981 = vmatpush1.msra.mxu0 0.0
    %982 = vmatprep.subr.mxu0 0.0
    %983 = vmatpush1.msra.mxu0 0.0
    %984 = vmatprep.subr.mxu0 0.0
    %985 = vmatpush1.msra.mxu0 0.0
    %986 = vmatprep.subr.mxu0 0.0
    %987 = vmatpush1.msra.mxu0 0.0
    %988 = vmatprep.subr.mxu0 0.0
    %989 = vmatpush1.msra.mxu0 0.0
    %990 = vmatprep.subr.mxu0 0.0
    %991 = vmatpush1.msra.mxu0 0.0
    %992 = vmatprep.subr.mxu0 0.0
    %993 = vmatpush1.msra.mxu0 0.0
    %994 = vmatprep.subr.mxu0 0.0
    %995 = vmatpush1.msra.mxu0 0.0
    %996 = vmatprep.subr.mxu0 0.0
    %997 = vmatpush1.msra.mxu0 0.0
    %998 = vmatprep.subr.mxu0 0.0
    %999 = vmatpush1.msra.mxu0 0.0
    %1000 = vmatprep.subr.mxu0 0.0
    %1001 = vmatpush1.msra.mxu0 0.0
    %1002 = vmatprep.subr.mxu0 0.0
    %1003 = vmatpush1.msra.mxu0 0.0
    %1004 = vmatprep.mubr.f32.mxu0 0.0
    %1005 = vmatmul.mubr.f32.gmra.mrb[0].mxu0 %v938
    %v1006 = vpop.f32.mrb[0].mxu0
    %v1007 = vadd.f32 0.0, %v1006
    %v1008 = vpop.f32.mrb[0].mxu0
    %1009 = vdwg.mxu0
    %v1010 = vadd.f32 %v233, %v1007
    %v1011 = vxor.u32 %v1010, 2147483648
    %v1012 = vmul.f32 %v1011, 1.442695
    %v1013 = vpow.pop %v1012
    %v1014 = vadd.f32 %v1013, 1.0
    %v1015 = vrcp.pop %v1014
    %v1016 = vmul.f32 1.0, %v1015
    %v1017 = vtanh.pop %v1010
    %v1018 = vmul.f32 %v1016, %v928
    %1020 = vrot.lane.b32.xlu0 %v1017, 64
    %v1021 = vpop.permute.xlu0 %1020
    %v1023 = vmul.f32 %v1016, %v1021
    %1025 = vrot.lane.b32.xlu0 %v1023, 32
    %v1026 = vpop.permute.xlu0 %1025
    %v1028 = vadd.f32 %v1018, %v1026
    %v1029 = vtanh.pop %v1028
    %1031 = vrot.lane.b32.xlu0 %v1029, 64
    %v1032 = vpop.permute.xlu0 %1031
    %v1034 = vmul.f32 %v1016, %v1032
    %1036 = vset.pattern.permute.xlu0 2
    %1037 = vperm.xlu0 %1036, %v39
    %v1038 = vpop.permute.xlu0 %1037
    %1041 = vset.pattern.permute.xlu0 2
    %1042 = vperm.xlu0 %1041, %v40
    %v1043 = vpop.permute.xlu0 %1042
    %1046 = vset.pattern.permute.xlu0 2
    %1047 = vperm.xlu0 %1046, %v41
    %v1048 = vpop.permute.xlu0 %1047
    %1051 = vset.pattern.permute.xlu0 2
    %1052 = vperm.xlu0 %1051, %v42
    %v1053 = vpop.permute.xlu0 %1052
    %1056 = vset.pattern.permute.xlu0 2
    %1057 = vperm.xlu0 %1056, %v43
    %v1058 = vpop.permute.xlu0 %1057
    %1061 = vset.pattern.permute.xlu0 2
    %1062 = vperm.xlu0 %1061, %v44
    %v1063 = vpop.permute.xlu0 %1062
    %1066 = vset.pattern.permute.xlu0 2
    %1067 = vperm.xlu0 %1066, %v45
    %v1068 = vpop.permute.xlu0 %1067
    %1071 = vset.pattern.permute.xlu0 2
    %1072 = vperm.xlu0 %1071, %v46
    %v1073 = vpop.permute.xlu0 %1072
    %v1075 = vmul.f32 %v334, %v1038
    %v1076 = vmul.f32 %v434, %v1043
    %v1077 = vmul.f32 %v534, %v1048
    %v1078 = vmul.f32 %v634, %v1053
    %v1079 = vmul.f32 %v734, %v1058
    %v1080 = vmul.f32 %v834, %v1063
    %v1081 = vmul.f32 %v934, %v1068
    %v1082 = vmul.f32 %v1034, %v1073
    %v1083 = vld [vmem:[%s2] sm:$0xff]
    %v1084 = vld [vmem:[%s2 + $0x8] sm:$0xff]
    %v1085 = vld [vmem:[%s2 + $0x10] sm:$0xff]
    %v1086 = vld [vmem:[%s2 + $0x18] sm:$0xff]
    %v1087 = vld [vmem:[%s2 + $0x20] sm:$0x1]
    %v1088 = vlaneseq
    %v1089 = vshrl.u32 %v1088, 7
    %v1090 = vsub.s32 0, %v1089
    %v1091 = vrot.slane %v1087, %v1090
    %1100 = vrot.lane.b32.xlu0 %v1075, 32
    %v1101 = vpop.permute.xlu0 %1100
    %1102 = vrot.lane.b32.xlu0 %v1076, 32
    %v1103 = vpop.permute.xlu0 %1102
    %1104 = vrot.lane.b32.xlu0 %v1077, 32
    %v1105 = vpop.permute.xlu0 %1104
    %1106 = vrot.lane.b32.xlu0 %v1078, 32
    %v1107 = vpop.permute.xlu0 %1106
    %1108 = vrot.lane.b32.xlu0 %v1079, 32
    %v1109 = vpop.permute.xlu0 %1108
    %1110 = vrot.lane.b32.xlu0 %v1080, 32
    %v1111 = vpop.permute.xlu0 %1110
    %1112 = vrot.lane.b32.xlu0 %v1081, 32
    %v1113 = vpop.permute.xlu0 %1112
    %1114 = vrot.lane.b32.xlu0 %v1082, 32
    %v1115 = vpop.permute.xlu0 %1114
    %v1116 = vsel %vm106, %v1101, 0
    %v1118 = vsel %vm106, %v1103, 0
    %v1120 = vsel %vm106, %v1105, 0
    %v1122 = vsel %vm106, %v1107, 0
    %v1124 = vsel %vm106, %v1109, 0
    %v1126 = vsel %vm106, %v1111, 0
    %v1128 = vsel %vm106, %v1113, 0
    %v1130 = vsel %vm106, %v1115, 0
    %1132 = vmatprep.subr.mxu0 0.0
    %1133 = vmatpush1.msra.mxu0 %v1083
    %1134 = vmatprep.subr.mxu0 0.0
    %1135 = vmatpush1.msra.mxu0 %v1084
    %1136 = vmatprep.subr.mxu0 0.0
    %1137 = vmatpush1.msra.mxu0 %v1085
    %1138 = vmatprep.subr.mxu0 0.0
    %1139 = vmatpush1.msra.mxu0 %v1086
    %1140 = vmatprep.subr.mxu0 0.0
    %1141 = vmatpush1.msra.mxu0 0.0
    %1142 = vmatprep.subr.mxu0 0.0
    %1143 = vmatpush1.msra.mxu0 0.0
    %1144 = vmatprep.subr.mxu0 0.0
    %1145 = vmatpush1.msra.mxu0 0.0
    %1146 = vmatprep.subr.mxu0 0.0
    %1147 = vmatpush1.msra.mxu0 0.0
    %1148 = vmatprep.subr.mxu0 0.0
    %1149 = vmatpush1.msra.mxu0 0.0
    %1150 = vmatprep.subr.mxu0 0.0
    %1151 = vmatpush1.msra.mxu0 0.0
    %1152 = vmatprep.subr.mxu0 0.0
    %1153 = vmatpush1.msra.mxu0 0.0
    %1154 = vmatprep.subr.mxu0 0.0
    %1155 = vmatpush1.msra.mxu0 0.0
    %1156 = vmatprep.subr.mxu0 0.0
    %1157 = vmatpush1.msra.mxu0 0.0
    %1158 = vmatprep.subr.mxu0 0.0
    %1159 = vmatpush1.msra.mxu0 0.0
    %1160 = vmatprep.subr.mxu0 0.0
    %1161 = vmatpush1.msra.mxu0 0.0
    %1162 = vmatprep.subr.mxu0 0.0
    %1163 = vmatpush1.msra.mxu0 0.0
    %1164 = vmatprep.subr.mxu0 0.0
    %1165 = vmatpush1.msra.mxu0 0.0
    %1166 = vmatprep.subr.mxu0 0.0
    %1167 = vmatpush1.msra.mxu0 0.0
    %1168 = vmatprep.subr.mxu0 0.0
    %1169 = vmatpush1.msra.mxu0 0.0
    %1170 = vmatprep.subr.mxu0 0.0
    %1171 = vmatpush1.msra.mxu0 0.0
    %1172 = vmatprep.subr.mxu0 0.0
    %1173 = vmatpush1.msra.mxu0 0.0
    %1174 = vmatprep.subr.mxu0 0.0
    %1175 = vmatpush1.msra.mxu0 0.0
    %1176 = vmatprep.subr.mxu0 0.0
    %1177 = vmatpush1.msra.mxu0 0.0
    %1178 = vmatprep.subr.mxu0 0.0
    %1179 = vmatpush1.msra.mxu0 0.0
    %1180 = vmatprep.subr.mxu0 0.0
    %1181 = vmatpush1.msra.mxu0 0.0
    %1182 = vmatprep.subr.mxu0 0.0
    %1183 = vmatpush1.msra.mxu0 0.0
    %1184 = vmatprep.subr.mxu0 0.0
    %1185 = vmatpush1.msra.mxu0 0.0
    %1186 = vmatprep.subr.mxu0 0.0
    %1187 = vmatpush1.msra.mxu0 0.0
    %1188 = vmatprep.subr.mxu0 0.0
    %1189 = vmatpush1.msra.mxu0 0.0
    %1190 = vmatprep.subr.mxu0 0.0
    %1191 = vmatpush1.msra.mxu0 0.0
    %1192 = vmatprep.subr.mxu0 0.0
    %1193 = vmatpush1.msra.mxu0 0.0
    %1194 = vmatprep.subr.mxu0 0.0
    %1195 = vmatpush1.msra.mxu0 0.0
    %1196 = vmatprep.mubr.f32.mxu0 0.0
    %1197 = vmatmul.mubr.f32.gmra.mrb[0].mxu0 %v1116
    %v1198 = vpop.f32.mrb[0].mxu0
    %v1199 = vadd.f32 %v1091, %v1198
    %v1200 = vpop.f32.mrb[0].mxu0
    %1201 = vmatprep.mubr.f32.mxu0 0.0
    %1202 = vmatmul.mubr.f32.gmra.mrb[0].mxu0 %v1118
    %v1203 = vpop.f32.mrb[0].mxu0
    %v1204 = vadd.f32 %v1091, %v1203
    %v1205 = vpop.f32.mrb[0].mxu0
    %1206 = vmatprep.mubr.f32.mxu0 0.0
    %1207 = vmatmul.mubr.f32.gmra.mrb[0].mxu0 %v1120
    %v1208 = vpop.f32.mrb[0].mxu0
    %v1209 = vadd.f32 %v1091, %v1208
    %v1210 = vpop.f32.mrb[0].mxu0
    %1211 = vmatprep.mubr.f32.mxu0 0.0
    %1212 = vmatmul.mubr.f32.gmra.mrb[0].mxu0 %v1122
    %v1213 = vpop.f32.mrb[0].mxu0
    %v1214 = vadd.f32 %v1091, %v1213
    %v1215 = vpop.f32.mrb[0].mxu0
    %1216 = vmatprep.mubr.f32.mxu0 0.0
    %1217 = vmatmul.mubr.f32.gmra.mrb[0].mxu0 %v1124
    %v1218 = vpop.f32.mrb[0].mxu0
    %v1219 = vadd.f32 %v1091, %v1218
    %v1220 = vpop.f32.mrb[0].mxu0
    %1221 = vmatprep.mubr.f32.mxu0 0.0
    %1222 = vmatmul.mubr.f32.gmra.mrb[0].mxu0 %v1126
    %v1223 = vpop.f32.mrb[0].mxu0
    %v1224 = vadd.f32 %v1091, %v1223
    %v1225 = vpop.f32.mrb[0].mxu0
    %1226 = vmatprep.mubr.f32.mxu0 0.0
    %1227 = vmatmul.mubr.f32.gmra.mrb[0].mxu0 %v1128
    %v1228 = vpop.f32.mrb[0].mxu0
    %v1229 = vadd.f32 %v1091, %v1228
    %v1230 = vpop.f32.mrb[0].mxu0
    %1231 = vmatprep.mubr.f32.mxu0 0.0
    %1232 = vmatmul.mubr.f32.gmra.mrb[0].mxu0 %v1130
    %v1233 = vpop.f32.mrb[0].mxu0
    %v1234 = vadd.f32 %v1091, %v1233
    %v1235 = vpop.f32.mrb[0].mxu0
    %1236 = vdwg.mxu0
    %vm1237 = vcmp.ne.s32.totalorder %v15, 0
    %vm1238 = vcmp.ne.s32.totalorder %v16, 0
    %vm1239 = vcmp.ne.s32.totalorder %v17, 0
    %vm1240 = vcmp.ne.s32.totalorder %v18, 0
    %vm1241 = vcmp.ne.s32.totalorder %v19, 0
    %vm1242 = vcmp.ne.s32.totalorder %v20, 0
    %vm1243 = vcmp.ne.s32.totalorder %v21, 0
    %vm1244 = vcmp.ne.s32.totalorder %v22, 0
    %v1245 = vsel %vm1237, 1, 0
    %v1246 = vsel %vm1238, 1, 0
    %v1247 = vsel %vm1239, 1, 0
    %v1248 = vsel %vm1240, 1, 0
    %v1249 = vsel %vm1241, 1, 0
    %v1250 = vsel %vm1242, 1, 0
    %v1251 = vsel %vm1243, 1, 0
    %v1252 = vsel %vm1244, 1, 0
    %v1253 = vcvt.s32.f32 %v1245
    %v1254 = vcvt.s32.f32 %v1246
    %v1255 = vcvt.s32.f32 %v1247
    %v1256 = vcvt.s32.f32 %v1248
    %v1257 = vcvt.s32.f32 %v1249
    %v1258 = vcvt.s32.f32 %v1250
    %v1259 = vcvt.s32.f32 %v1251
    %v1260 = vcvt.s32.f32 %v1252
    %1261 = vset.pattern.permute.xlu0 1
    %1262 = vperm.xlu0 %1261, %v15
    %v1263 = vpop.permute.xlu0 %1262
    %1264 = vset.pattern.permute.xlu0 1
    %1265 = vperm.xlu0 %1264, %v16
    %v1266 = vpop.permute.xlu0 %1265
    %1267 = vset.pattern.permute.xlu0 1
    %1268 = vperm.xlu0 %1267, %v17
    %v1269 = vpop.permute.xlu0 %1268
    %1270 = vset.pattern.permute.xlu0 1
    %1271 = vperm.xlu0 %1270, %v18
    %v1272 = vpop.permute.xlu0 %1271
    %1273 = vset.pattern.permute.xlu0 1
    %1274 = vperm.xlu0 %1273, %v19
    %v1275 = vpop.permute.xlu0 %1274
    %1276 = vset.pattern.permute.xlu0 1
    %1277 = vperm.xlu0 %1276, %v20
    %v1278 = vpop.permute.xlu0 %1277
    %1279 = vset.pattern.permute.xlu0 1
    %1280 = vperm.xlu0 %1279, %v21
    %v1281 = vpop.permute.xlu0 %1280
    %1282 = vset.pattern.permute.xlu0 1
    %1283 = vperm.xlu0 %1282, %v22
    %v1284 = vpop.permute.xlu0 %1283
    %vm1285 = vcmp.eq.s32.totalorder %v57, %v1263
    %vm1286 = vcmp.eq.s32.totalorder %v57, %v1266
    %vm1287 = vcmp.eq.s32.totalorder %v57, %v1269
    %vm1288 = vcmp.eq.s32.totalorder %v57, %v1272
    %vm1289 = vcmp.eq.s32.totalorder %v57, %v1275
    %vm1290 = vcmp.eq.s32.totalorder %v57, %v1278
    %vm1291 = vcmp.eq.s32.totalorder %v57, %v1281
    %vm1292 = vcmp.eq.s32.totalorder %v57, %v1284
    %v1293 = vsel %vm1285, 1, 0
    %v1294 = vsel %vm1286, 1, 0
    %v1295 = vsel %vm1287, 1, 0
    %v1296 = vsel %vm1288, 1, 0
    %v1297 = vsel %vm1289, 1, 0
    %v1298 = vsel %vm1290, 1, 0
    %v1299 = vsel %vm1291, 1, 0
    %v1300 = vsel %vm1292, 1, 0
    %v1301 = vcvt.s32.f32 %v1293
    %v1302 = vcvt.s32.f32 %v1294
    %v1303 = vcvt.s32.f32 %v1295
    %v1304 = vcvt.s32.f32 %v1296
    %v1305 = vcvt.s32.f32 %v1297
    %v1306 = vcvt.s32.f32 %v1298
    %v1307 = vcvt.s32.f32 %v1299
    %v1308 = vcvt.s32.f32 %v1300
    %v1309 = vmul.f32 %v1301, %v1199
    %v1310 = vmul.f32 %v1302, %v1204
    %v1311 = vmul.f32 %v1303, %v1209
    %v1312 = vmul.f32 %v1304, %v1214
    %v1313 = vmul.f32 %v1305, %v1219
    %v1314 = vmul.f32 %v1306, %v1224
    %v1315 = vmul.f32 %v1307, %v1229
    %v1316 = vmul.f32 %v1308, %v1234
    %v1317 = vsel %vm106, %v1309, 0.0
    %1318 = vadd.xlane.f32.xlu0 %v1317
    %v1319 = vpop.xlane.xlu0 %1318
    %v1320 = vsel %vm106, %v1310, 0.0
    %1321 = vadd.xlane.f32.xlu0 %v1320
    %v1322 = vpop.xlane.xlu0 %1321
    %v1323 = vsel %vm106, %v1311, 0.0
    %1324 = vadd.xlane.f32.xlu0 %v1323
    %v1325 = vpop.xlane.xlu0 %1324
    %v1326 = vsel %vm106, %v1312, 0.0
    %1327 = vadd.xlane.f32.xlu0 %v1326
    %v1328 = vpop.xlane.xlu0 %1327
    %v1329 = vsel %vm106, %v1313, 0.0
    %1330 = vadd.xlane.f32.xlu0 %v1329
    %v1331 = vpop.xlane.xlu0 %1330
    %v1332 = vsel %vm106, %v1314, 0.0
    %1333 = vadd.xlane.f32.xlu0 %v1332
    %v1334 = vpop.xlane.xlu0 %1333
    %v1335 = vsel %vm106, %v1315, 0.0
    %1336 = vadd.xlane.f32.xlu0 %v1335
    %v1337 = vpop.xlane.xlu0 %1336
    %v1338 = vsel %vm106, %v1316, 0.0
    %1339 = vadd.xlane.f32.xlu0 %v1338
    %v1340 = vpop.xlane.xlu0 %1339
    %v1341 = vsel %vm106, %v1199, -inf
    %1342 = vmax.xlane.f32.xlu0 %v1341
    %v1343 = vpop.xlane.xlu0 %1342
    %v1344 = vsel %vm106, %v1204, -inf
    %1345 = vmax.xlane.f32.xlu0 %v1344
    %v1346 = vpop.xlane.xlu0 %1345
    %v1347 = vsel %vm106, %v1209, -inf
    %1348 = vmax.xlane.f32.xlu0 %v1347
    %v1349 = vpop.xlane.xlu0 %1348
    %v1350 = vsel %vm106, %v1214, -inf
    %1351 = vmax.xlane.f32.xlu0 %v1350
    %v1352 = vpop.xlane.xlu0 %1351
    %v1353 = vsel %vm106, %v1219, -inf
    %1354 = vmax.xlane.f32.xlu0 %v1353
    %v1355 = vpop.xlane.xlu0 %1354
    %v1356 = vsel %vm106, %v1224, -inf
    %1357 = vmax.xlane.f32.xlu0 %v1356
    %v1358 = vpop.xlane.xlu0 %1357
    %v1359 = vsel %vm106, %v1229, -inf
    %1360 = vmax.xlane.f32.xlu0 %v1359
    %v1361 = vpop.xlane.xlu0 %1360
    %v1362 = vsel %vm106, %v1234, -inf
    %1363 = vmax.xlane.f32.xlu0 %v1362
    %v1364 = vpop.xlane.xlu0 %1363
    %v1365 = vsub.f32 %v1199, %v1343
    %v1366 = vsub.f32 %v1204, %v1346
    %v1367 = vsub.f32 %v1209, %v1349
    %v1368 = vsub.f32 %v1214, %v1352
    %v1369 = vsub.f32 %v1219, %v1355
    %v1370 = vsub.f32 %v1224, %v1358
    %v1371 = vsub.f32 %v1229, %v1361
    %v1372 = vsub.f32 %v1234, %v1364
    %v1373 = vmul.f32 %v1365, 1.442695
    %v1374 = vpow.pop %v1373
    %v1375 = vmul.f32 %v1366, 1.442695
    %v1376 = vpow.pop %v1375
    %v1377 = vmul.f32 %v1367, 1.442695
    %v1378 = vpow.pop %v1377
    %v1379 = vmul.f32 %v1368, 1.442695
    %v1380 = vpow.pop %v1379
    %v1381 = vmul.f32 %v1369, 1.442695
    %v1382 = vpow.pop %v1381
    %v1383 = vmul.f32 %v1370, 1.442695
    %v1384 = vpow.pop %v1383
    %v1385 = vmul.f32 %v1371, 1.442695
    %v1386 = vpow.pop %v1385
    %v1387 = vmul.f32 %v1372, 1.442695
    %v1388 = vpow.pop %v1387
    %v1389 = vsel %vm106, %v1374, 0.0
    %1390 = vadd.xlane.f32.xlu0 %v1389
    %v1391 = vpop.xlane.xlu0 %1390
    %v1392 = vsel %vm106, %v1376, 0.0
    %1393 = vadd.xlane.f32.xlu0 %v1392
    %v1394 = vpop.xlane.xlu0 %1393
    %v1395 = vsel %vm106, %v1378, 0.0
    %1396 = vadd.xlane.f32.xlu0 %v1395
    %v1397 = vpop.xlane.xlu0 %1396
    %v1398 = vsel %vm106, %v1380, 0.0
    %1399 = vadd.xlane.f32.xlu0 %v1398
    %v1400 = vpop.xlane.xlu0 %1399
    %v1401 = vsel %vm106, %v1382, 0.0
    %1402 = vadd.xlane.f32.xlu0 %v1401
    %v1403 = vpop.xlane.xlu0 %1402
    %v1404 = vsel %vm106, %v1384, 0.0
    %1405 = vadd.xlane.f32.xlu0 %v1404
    %v1406 = vpop.xlane.xlu0 %1405
    %v1407 = vsel %vm106, %v1386, 0.0
    %1408 = vadd.xlane.f32.xlu0 %v1407
    %v1409 = vpop.xlane.xlu0 %1408
    %v1410 = vsel %vm106, %v1388, 0.0
    %1411 = vadd.xlane.f32.xlu0 %v1410
    %v1412 = vpop.xlane.xlu0 %1411
    %v1413 = vlog2.pop %v1391
    %v1414 = vmul.f32 %v1413, 0.6931472
    %v1415 = vlog2.pop %v1394
    %v1416 = vmul.f32 %v1415, 0.6931472
    %v1417 = vlog2.pop %v1397
    %v1418 = vmul.f32 %v1417, 0.6931472
    %v1419 = vlog2.pop %v1400
    %v1420 = vmul.f32 %v1419, 0.6931472
    %v1421 = vlog2.pop %v1403
    %v1422 = vmul.f32 %v1421, 0.6931472
    %v1423 = vlog2.pop %v1406
    %v1424 = vmul.f32 %v1423, 0.6931472
    %v1425 = vlog2.pop %v1409
    %v1426 = vmul.f32 %v1425, 0.6931472
    %v1427 = vlog2.pop %v1412
    %v1428 = vmul.f32 %v1427, 0.6931472
    %v1429 = vadd.f32 %v1343, %v1414
    %v1430 = vadd.f32 %v1346, %v1416
    %v1431 = vadd.f32 %v1349, %v1418
    %v1432 = vadd.f32 %v1352, %v1420
    %v1433 = vadd.f32 %v1355, %v1422
    %v1434 = vadd.f32 %v1358, %v1424
    %v1435 = vadd.f32 %v1361, %v1426
    %v1436 = vadd.f32 %v1364, %v1428
    %v1437 = vsub.f32 %v1429, %v1319
    %v1438 = vsub.f32 %v1430, %v1322
    %v1439 = vsub.f32 %v1431, %v1325
    %v1440 = vsub.f32 %v1432, %v1328
    %v1441 = vsub.f32 %v1433, %v1331
    %v1442 = vsub.f32 %v1434, %v1334
    %v1443 = vsub.f32 %v1435, %v1337
    %v1444 = vsub.f32 %v1436, %v1340
    %v1445 = vmul.f32 %v1437, %v1253
    %v1446 = vmul.f32 %v1438, %v1254
    %v1447 = vmul.f32 %v1439, %v1255
    %v1448 = vmul.f32 %v1440, %v1256
    %v1449 = vmul.f32 %v1441, %v1257
    %v1450 = vmul.f32 %v1442, %v1258
    %v1451 = vmul.f32 %v1443, %v1259
    %v1452 = vmul.f32 %v1444, %v1260
    %1461 = vrot.lane.b32.xlu0 %v1445, 127
    %v1462 = vpop.permute.xlu0 %1461
    %1463 = vrot.lane.b32.xlu0 %v1446, 127
    %v1464 = vpop.permute.xlu0 %1463
    %1465 = vrot.lane.b32.xlu0 %v1447, 127
    %v1466 = vpop.permute.xlu0 %1465
    %1467 = vrot.lane.b32.xlu0 %v1448, 127
    %v1468 = vpop.permute.xlu0 %1467
    %1469 = vrot.lane.b32.xlu0 %v1449, 127
    %v1470 = vpop.permute.xlu0 %1469
    %1471 = vrot.lane.b32.xlu0 %v1450, 127
    %v1472 = vpop.permute.xlu0 %1471
    %1473 = vrot.lane.b32.xlu0 %v1451, 127
    %v1474 = vpop.permute.xlu0 %1473
    %1475 = vrot.lane.b32.xlu0 %v1452, 127
    %v1476 = vpop.permute.xlu0 %1475
    %vm1485 = vcmask 7168
    %v1486 = vsel %vm1485, %v1462, 0.0
    %v1487 = vsel %vm1485, %v1464, 0.0
    %v1488 = vadd.f32 %v1486, %v1487
    %v1489 = vsel %vm1485, %v1466, 0.0
    %v1490 = vadd.f32 %v1488, %v1489
    %v1491 = vsel %vm1485, %v1468, 0.0
    %v1492 = vadd.f32 %v1490, %v1491
    %v1493 = vsel %vm1485, %v1470, 0.0
    %v1494 = vadd.f32 %v1492, %v1493
    %v1495 = vsel %vm1485, %v1472, 0.0
    %v1496 = vadd.f32 %v1494, %v1495
    %v1497 = vsel %vm1485, %v1474, 0.0
    %v1498 = vadd.f32 %v1496, %v1497
    %v1499 = vsel %vm1485, %v1476, 0.0
    %v1500 = vadd.f32 %v1498, %v1499
    %1501 = vadd.xlane.f32.xlu0 %v1500
    %v1502 = vpop.xlane.xlu0 %1501
    %v1503 = vrot.slane %v1502, 4
    %v1504 = vadd.f32 %v1502, %v1503
    %v1505 = vrot.slane %v1504, 2
    %v1506 = vadd.f32 %v1504, %v1505
    %v1507 = vrot.slane %v1506, 1
    %v1508 = vadd.f32 %v1506, %v1507
    %s1509 = vtos %v1508
    %v1510 = vstv %s1509
    %1519 = vrot.lane.b32.xlu0 %v1253, 127
    %v1520 = vpop.permute.xlu0 %1519
    %1521 = vrot.lane.b32.xlu0 %v1254, 127
    %v1522 = vpop.permute.xlu0 %1521
    %1523 = vrot.lane.b32.xlu0 %v1255, 127
    %v1524 = vpop.permute.xlu0 %1523
    %1525 = vrot.lane.b32.xlu0 %v1256, 127
    %v1526 = vpop.permute.xlu0 %1525
    %1527 = vrot.lane.b32.xlu0 %v1257, 127
    %v1528 = vpop.permute.xlu0 %1527
    %1529 = vrot.lane.b32.xlu0 %v1258, 127
    %v1530 = vpop.permute.xlu0 %1529
    %1531 = vrot.lane.b32.xlu0 %v1259, 127
    %v1532 = vpop.permute.xlu0 %1531
    %1533 = vrot.lane.b32.xlu0 %v1260, 127
    %v1534 = vpop.permute.xlu0 %1533
    %v1543 = vsel %vm1485, %v1520, 0.0
    %v1544 = vsel %vm1485, %v1522, 0.0
    %v1545 = vadd.f32 %v1543, %v1544
    %v1546 = vsel %vm1485, %v1524, 0.0
    %v1547 = vadd.f32 %v1545, %v1546
    %v1548 = vsel %vm1485, %v1526, 0.0
    %v1549 = vadd.f32 %v1547, %v1548
    %v1550 = vsel %vm1485, %v1528, 0.0
    %v1551 = vadd.f32 %v1549, %v1550
    %v1552 = vsel %vm1485, %v1530, 0.0
    %v1553 = vadd.f32 %v1551, %v1552
    %v1554 = vsel %vm1485, %v1532, 0.0
    %v1555 = vadd.f32 %v1553, %v1554
    %v1556 = vsel %vm1485, %v1534, 0.0
    %v1557 = vadd.f32 %v1555, %v1556
    %1558 = vadd.xlane.f32.xlu0 %v1557
    %v1559 = vpop.xlane.xlu0 %1558
    %v1560 = vrot.slane %v1559, 4
    %v1561 = vadd.f32 %v1559, %v1560
    %v1562 = vrot.slane %v1561, 2
    %v1563 = vadd.f32 %v1561, %v1562
    %v1564 = vrot.slane %v1563, 1
    %v1565 = vadd.f32 %v1563, %v1564
    %s1566 = vtos %v1565
    %v1567 = vstv %s1566
    %v1568 = vrcp.pop %v1567
    %v1569 = vmul.f32 %v1510, %v1568
    %vm1570 = vcmask 0
    %1571 = vst.msk [vmem:[#allocation2] sm:$0x1] %vm1570, %v1569
    // Predicated region
    $region14: #{lang_reconstruction_loss.1} parent=1 // pred_check
      _
    $region15: #{lang_reconstruction_loss.1} parent=1 // pred_check_branch
      %1573 = sbr.rel (0) target = $region17
    $region16: #{lang_reconstruction_loss.1} parent=1 // pred_region
      %s1575 = ssub.s32 16, 16
      %1576 = vsyncadd [#allocation3], %s1575
      %s1578 = sshll.u32 [#allocation2], 4
      %s1579 = int_to_ptr.vmem [resolvable:$true] %s1578
      %1581 = dma.vmem_to_hbm [thread:$0]  %s1579, 16, %s3, [#allocation3]
    $region17: #{lang_reconstruction_loss.1} parent=1 // pred_fallthru
      _
    // Predicated region
    $region18: #{lang_reconstruction_loss.1} parent=1 // pred_check
      _
    $region19: #{lang_reconstruction_loss.1} parent=1 // pred_check_branch
      %1583 = sbr.rel (0) target = $region21
    $region20: #{lang_reconstruction_loss.1} parent=1 // pred_region
      %1584 = dma.done [#allocation3], 16
    $region21: #{lang_reconstruction_loss.1} parent=1 // pred_fallthru
      _
    %1585 = vsyncpa [#allocation3], 1

</llo_original>
